<compile_context>
chip_gen: v7x
topology: tpu7x:2x2x1
jax: 0.10.0
libtpu: 0.0.40
codegen_flags: <defaults>
</compile_context>

<pallas_src>
import functools
import math

import jax
import jax.numpy as jnp
from jax.experimental import pallas as pl
from jax.experimental.pallas import tpu as pltpu

LANE = 128


def _round_up(x, m):
    return (x + m - 1) // m * m


# ----------------------------- Pallas kernel --------------------------------

def _conv3x3_bn_kernel(*refs, stride, dilation, fuse_gate, rh):
    """One (batch, row-tile, cout-tile) step of 3x3 conv + folded BN (+ gate).

    refs (fuse_gate=False): xm, xh, w, b, o
    refs (fuse_gate=True) : xm, xh, w, b, x_id, k2, o
      xm  : (1, TH*stride, Wp, Cp)   main rows of the zero-padded input
      xh  : (1, 2*dilation, Wp, Cp)  halo rows directly below the main block
      w   : (9*Cp, TCO)              tap-major [kh, kw, cin] weights (BN folded)
      b   : (1, TCO)                 folded BN bias (float32)
      x_id: (1, TH, Wo, TCO)         identity rows for the gate
      k2  : (1, TH//rh, Wo, TCO)     pooled-branch rows (H-upsampled in-kernel)
      o   : (1, TH, Wo, TCO)
    """
    if fuse_gate:
        xm_ref, xh_ref, w_ref, b_ref, xid_ref, k2_ref, o_ref = refs
    else:
        xm_ref, xh_ref, w_ref, b_ref, o_ref = refs

    _, TH, Wo, TCO = o_ref.shape
    THI = xm_ref.shape[1]
    Cp = xm_ref.shape[-1]
    s, d = stride, dilation

    # Three matmuls (one per kernel row kh), K = 3*Cp each, f32 accumulation on
    # the MXU.  Taps are sliced straight out of the input refs; only the
    # <= 2*dilation boundary rows per kh are assembled from the halo ref, so
    # there is no full-slab copy and no 9*Cp-wide im2col buffer.
    acc = None
    for kh in range(3):
        h0 = kh * d
        # number of output rows whose input row (h0 + t*stride) is in the main block
        n_main = max(0, min(TH, (THI - 1 - h0) // s + 1))
        n_fr = TH - n_main
        taps = []
        for kw in range(3):
            w0 = kw * d
            pieces = []
            if n_main > 0:
                if s == 1:
                    pieces.append(xm_ref[0, h0:h0 + n_main, w0:w0 + Wo, :])
                else:
                    span_w = (Wo - 1) * s + 1
                    rows = xm_ref[0, pl.ds(h0, n_main, stride=s),
                                  w0:w0 + span_w, :]
                    pieces.append(rows[:, ::s, :])
            if n_fr > 0:
                f0 = h0 + n_main * s - THI
                if s == 1:
                    pieces.append(xh_ref[0, f0:f0 + n_fr, w0:w0 + Wo, :])
                else:
                    span_w = (Wo - 1) * s + 1
                    rows = xh_ref[0, pl.ds(f0, n_fr, stride=s),
                                  w0:w0 + span_w, :]
                    pieces.append(rows[:, ::s, :])
            tap = pieces[0] if len(pieces) == 1 else jnp.concatenate(pieces, axis=0)
            taps.append(tap)
        patch = jnp.concatenate(taps, axis=-1).reshape(TH * Wo, 3 * Cp)
        part = jnp.dot(patch.astype(w_ref.dtype),
                       w_ref[kh * 3 * Cp:(kh + 1) * 3 * Cp, :],
                       preferred_element_type=jnp.float32)
        acc = part if acc is None else acc + part

    out = (acc + b_ref[...].astype(jnp.float32)).reshape(TH, Wo, TCO)

    if fuse_gate:
        k2 = k2_ref[0].astype(jnp.float32)                # (TH//rh, Wo, TCO)
        if rh > 1:                                        # nearest row-upsample
            th2 = TH // rh
            k2 = jnp.broadcast_to(k2[:, None, :, :], (th2, rh, Wo, TCO))
            k2 = k2.reshape(TH, Wo, TCO)
        out = out * jax.nn.sigmoid(xid_ref[0].astype(jnp.float32) + k2)

    o_ref[0] = out.astype(o_ref.dtype)


# ----------------------------- kernel wrapper --------------------------------

def _choose_tile(Ho, Wo, Wp, Cp, Coutp, stride, dilation, in_size, out_size,
                 budget=20 << 20, m_cap=4096):
    """Pick the output-row tile TH and halo height (exact 2*dilation rows)."""
    halo = 2 * dilation                               # H dim needs no 8-alignment
    t_unit = max(1, halo // math.gcd(halo, stride))   # so TH*stride % halo == 0

    def vmem_est(th):                                 # per-step VMEM estimate
        thi = th * stride
        slab = 2 * (thi + halo) * Wp * Cp * in_size           # dbl-buffered input+halo
        outb = 2 * th * Wo * Coutp * out_size                 # dbl-buffered output
        gate = 4 * th * Wo * Coutp * in_size                  # gate blocks (worst case)
        wgt = 2 * 9 * Cp * Coutp * in_size                    # weight tiles
        tmp = th * Wo * (3 * Cp * in_size + 3 * Coutp * 4)    # per-kh patch + acc temps
        return slab + outb + gate + wgt + tmp

    th = t_unit
    while th < Ho:
        nxt = th * 2
        if nxt * Wo > m_cap or vmem_est(nxt) > budget:
            break
        th = nxt
    return min(th, _round_up(Ho, t_unit)), halo       # don't overshoot Ho


def conv3x3_bn(x, w_mat, bias_row, *, padding, dilation, stride, gate=None,
               out_dtype=None):
    """3x3 conv + folded eval-mode BN (+ optional fused SCConv gate).

    x        : (N, H, W, Cp)  NHWC, channels already padded to a multiple of 128
    w_mat    : (9*Cp, Coutp)  tap-major im2col weight matrix (BN scale folded)
    bias_row : (1, Coutp)     folded BN bias (float32)
    gate     : optional (identity, k2) -> out = conv * sigmoid(identity + up(k2))
    returns  : (N, Ho, Wo, Coutp) in out_dtype (defaults to w_mat.dtype)
    """
    N, H, W, Cp = x.shape
    KC, Coutp = w_mat.shape
    assert KC == 9 * Cp and Cp % LANE == 0 and Coutp % LANE == 0
    p, d, s = padding, dilation, stride
    out_dtype = w_mat.dtype if out_dtype is None else out_dtype

    Ho = (H + 2 * p - 2 * d - 1) // s + 1
    Wo = (W + 2 * p - 2 * d - 1) // s + 1
    Wp = W + 2 * p

    TH, HALO = _choose_tile(Ho, Wo, Wp, Cp, Coutp, s, d,
                            jnp.dtype(w_mat.dtype).itemsize,
                            jnp.dtype(out_dtype).itemsize)
    THI = TH * s
    n_h = pl.cdiv(Ho, TH)
    Ho_pad = n_h * TH
    hb = THI // HALO                                  # halo blocks per main block

    # single cout tile when Coutp is small; 256-wide tiles fill the v6e/v7x MXU
    if Coutp <= 512:
        TCO = Coutp
    elif Coutp % 256 == 0:
        TCO = 256
    else:
        TCO = LANE
    n_co = Coutp // TCO

    # zero-pad: conv halo (p) + bottom rows so every (main, halo) block is in range
    Hp_arr = max(H + 2 * p, n_h * THI + HALO)
    xp = jnp.pad(x.astype(w_mat.dtype),
                 ((0, 0), (p, Hp_arr - H - p), (p, p), (0, 0)))

    fuse_gate = gate is not None
    rh = 1
    gate_args, gate_specs = [], []
    if fuse_gate:
        x_id, k2 = gate
        assert x_id.shape == (N, Ho, Wo, Coutp), "gate fusion needs padding == dilation"
        assert k2.shape[0] == N and k2.shape[2] == Wo and k2.shape[3] == Coutp
        Hk = k2.shape[1]
        if Ho % Hk == 0 and TH % (Ho // Hk) == 0:
            rh = Ho // Hk                             # nearest H-upsample fused in-kernel
        else:
            # TODO(synk): non-integer nearest H-upsample stays in the wrapper.
            k2 = jnp.take(k2, (jnp.arange(Ho) * Hk) // Ho, axis=1)
            rh = 1
        x_id = jnp.pad(x_id.astype(w_mat.dtype),
                       ((0, 0), (0, Ho_pad - Ho), (0, 0), (0, 0)))
        k2 = jnp.pad(k2.astype(w_mat.dtype),
                     ((0, 0), (0, Ho_pad // rh - k2.shape[1]), (0, 0), (0, 0)))
        gate_args = [x_id, k2]
        gate_specs = [
            pl.BlockSpec((1, TH, Wo, TCO), lambda n, i, j: (n, i, 0, j)),
            pl.BlockSpec((1, TH // rh, Wo, TCO), lambda n, i, j: (n, i, 0, j)),
        ]

    kernel = functools.partial(_conv3x3_bn_kernel, stride=s, dilation=d,
                               fuse_gate=fuse_gate, rh=rh)

    out = pl.pallas_call(
        kernel,
        out_shape=jax.ShapeDtypeStruct((N, Ho_pad, Wo, Coutp), out_dtype),
        grid=(N, n_h, n_co),
        in_specs=[
            pl.BlockSpec((1, THI, Wp, Cp), lambda n, i, j: (n, i, 0, 0)),
            pl.BlockSpec((1, HALO, Wp, Cp), lambda n, i, j: (n, (i + 1) * hb, 0, 0)),
            pl.BlockSpec((9 * Cp, TCO), lambda n, i, j: (0, j)),
            pl.BlockSpec((1, TCO), lambda n, i, j: (0, j)),
        ] + gate_specs,
        out_specs=pl.BlockSpec((1, TH, Wo, TCO), lambda n, i, j: (n, i, 0, j)),
        compiler_params=pltpu.CompilerParams(
            dimension_semantics=("parallel", "parallel", "parallel"),
            vmem_limit_bytes=40 * 1024 * 1024),
    )(xp, xp, w_mat, bias_row, *gate_args)

    return out[:, :Ho]


# ----------------------------- plain-JAX glue --------------------------------

def avg_pool2d(x, r):
    """AvgPool2d(kernel_size=r, stride=r), floor mode, NHWC."""
    if r == 1:
        return x
    N, H, W, C = x.shape
    Hp, Wp = H // r, W // r
    x = x[:, :Hp * r, :Wp * r, :]
    return x.reshape(N, Hp, r, Wp, r, C).mean(axis=(2, 4))


def nearest_w(x, Wt):
    """Nearest-neighbor resize along W only (F.interpolate 'nearest' indexing)."""
    Ws = x.shape[2]
    if Ws == Wt:
        return x
    return jnp.take(x, (jnp.arange(Wt) * Ws) // Wt, axis=2)


def expand_group_weight(w, groups, cin):
    """Grouped conv weight (Cout, Cin//g, 3, 3) -> dense (Cout, Cin, 3, 3)."""
    if groups == 1:
        return w
    cout, cg = w.shape[0], w.shape[1]
    og = cout // groups
    dense = jnp.zeros((cout, cin) + w.shape[2:], w.dtype)
    for g in range(groups):
        dense = dense.at[g * og:(g + 1) * og, g * cg:(g + 1) * cg].set(
            w[g * og:(g + 1) * og])
    return dense


# ----------------------------- SCConv2D module -------------------------------

class SCConv2DPallas:
    """SCConv2D forward with eval-mode BatchNorm folded into each conv."""

    def __init__(self, inplanes, planes, stride, padding, dilation, groups,
                 pooling_r, key, compute_dtype=jnp.bfloat16):
        # The residual add `identity + interpolate(k2(x))` needs matching channels.
        assert inplanes == planes, "SCConv requires inplanes == planes"
        self.inplanes, self.planes = inplanes, planes
        self.stride, self.padding = stride, padding
        self.dilation, self.groups = dilation, groups
        self.pooling_r = pooling_r
        self.cin_p = _round_up(inplanes, LANE)
        self.cout_p = _round_up(planes, LANE)
        # bf16 is MXU-native on v5e/v6e/v7x and halves HBM/VMEM traffic for every
        # activation and intermediate; accumulation stays float32 in the kernel.
        self.compute_dtype = compute_dtype

        eps = 1e-5
        keys = jax.random.split(key, 3)
        self.branches = []
        for i, k in enumerate(keys):
            w = 0.1 * jax.random.normal(
                k, (planes, inplanes // groups, 3, 3), jnp.float32)
            # TODO(synk): groups > 1 is expanded to a dense block-diagonal weight;
            #             per-group matmul tiles would avoid the extra MXU/DMA work.
            w = expand_group_weight(w, groups, inplanes)
            # deterministic synthetic eval-mode BN parameters
            c = jnp.arange(planes, dtype=jnp.float32)
            gamma = 1.0 + 0.05 * c + 0.01 * i
            beta = 0.02 * c - 0.01 * i
            mean = 0.01 * c
            var = 1.0 + 0.005 * c
            scale = gamma / jnp.sqrt(var + eps)          # fold BN: y = s*conv + b
            bias = beta - mean * scale
            w = w * scale[:, None, None, None]
            # (Cout, Cin, 3, 3) -> tap-major (3, 3, Cin, Cout), pad channels to 128
            w = jnp.transpose(w, (2, 3, 1, 0))
            w = jnp.pad(w, ((0, 0), (0, 0),
                            (0, self.cin_p - inplanes), (0, self.cout_p - planes)))
            w_mat = w.reshape(9 * self.cin_p, self.cout_p).astype(compute_dtype)
            b_row = jnp.pad(bias, (0, self.cout_p - planes)).reshape(
                1, self.cout_p).astype(jnp.float32)
            self.branches.append((w_mat, b_row))

    def __call__(self, x_nchw):
        x = jnp.transpose(x_nchw, (0, 2, 3, 1)).astype(jnp.float32)   # NHWC
        N, H, W, C = x.shape
        assert C == self.inplanes
        # pad channels once; every intermediate stays lane-dense (C % 128 == 0)
        x = jnp.pad(x, ((0, 0), (0, 0), (0, 0), (0, self.cin_p - C)))

        (w2, b2), (w3, b3), (w4, b4) = self.branches

        # k2: AvgPool -> conv3x3 -> BN  (operates on the 1/r^2-size tensor, bf16 out)
        pooled = avg_pool2d(x, self.pooling_r)
        k2 = conv3x3_bn(pooled, w2, b2, padding=self.padding,
                        dilation=self.dilation, stride=1)
        # nearest upsample: W in the wrapper (small tensor), H fused in-kernel
        k2 = nearest_w(k2, W)

        # k3 conv with fused gate epilogue:  out = k3(x) * sigmoid(x + up(k2))
        gated = conv3x3_bn(x, w3, b3, padding=self.padding,
                           dilation=self.dilation, stride=1, gate=(x, k2))

        # k4: conv3x3 (stride handled inside the kernel) -> BN, float32 result
        out = conv3x3_bn(gated, w4, b4, padding=self.padding,
                         dilation=self.dilation, stride=self.stride,
                         out_dtype=jnp.float32)

        out = out[..., :self.planes]
        return jnp.transpose(out, (0, 3, 1, 2))          # back to NCHW


# ----------------------------------- main -------------------------------------

if __name__ == "__main__":
    key = jax.random.PRNGKey(0)
    k_param, k_x = jax.random.split(key)

    inplanes = planes = 4
    N, H, W = 2, 16, 16
    module = SCConv2DPallas(inplanes=inplanes, planes=planes, stride=1,
                            padding=1, dilation=1, groups=1, pooling_r=2,
                            key=k_param)

    x = jax.random.normal(k_x, (N, inplanes, H, W), jnp.float32)     # NCHW
    out = jax.block_until_ready(module(x))
    assert out.shape == (N, planes, H, W), out.shape
    assert bool(jnp.all(jnp.isfinite(out)))
    print("KERNEL_OK")
</pallas_src>

<mosaic_0001>
module attributes {stable_mosaic.version = 11 : i64} {
  func.func @_conv3x3_bn_kernel(%arg0: i32, %arg1: i32, %arg2: i32, %arg3: memref<1x8x10x128xbf16, #tpu.memory_space<vmem>>, %arg4: memref<1x2x10x128xbf16, #tpu.memory_space<vmem>>, %arg5: memref<1152x128xbf16, #tpu.memory_space<vmem>>, %arg6: memref<1x128xf32, #tpu.memory_space<vmem>>, %arg7: memref<1x8x8x128xbf16, #tpu.memory_space<vmem>>) attributes {dimension_semantics = [#tpu.dimension_semantics<parallel>, #tpu.dimension_semantics<parallel>, #tpu.dimension_semantics<parallel>], iteration_bounds = array<i64: 2, 1, 1>, scalar_prefetch = 0 : i64, scratch_operands = 0 : i64, tpu.core_type = #tpu.core_type<tc>, window_params = [{transform_indices = @transform_0, window_bounds = array<i64: 1, 8, 10, 128>}, {transform_indices = @transform_1, window_bounds = array<i64: 1, 2, 10, 128>}, {transform_indices = @transform_2, window_bounds = array<i64: 1152, 128>}, {transform_indices = @transform_3, window_bounds = array<i64: 1, 128>}, {transform_indices = @transform_4, window_bounds = array<i64: 1, 8, 8, 128>}]} {
    %c0 = arith.constant 0 : index
    %c0_0 = arith.constant 0 : index
    %c0_1 = arith.constant 0 : index
    %c0_2 = arith.constant 0 : index
    %0 = vector.load %arg3[%c0, %c0_0, %c0_1, %c0_2] : memref<1x8x10x128xbf16, #tpu.memory_space<vmem>>, vector<1x8x8x128xbf16>
    %1 = vector.shape_cast %0 : vector<1x8x8x128xbf16> to vector<8x8x128xbf16>
    %c0_3 = arith.constant 0 : index
    %c0_4 = arith.constant 0 : index
    %c1 = arith.constant 1 : index
    %c0_5 = arith.constant 0 : index
    %2 = vector.load %arg3[%c0_3, %c0_4, %c1, %c0_5] : memref<1x8x10x128xbf16, #tpu.memory_space<vmem>>, vector<1x8x8x128xbf16>
    %3 = vector.shape_cast %2 : vector<1x8x8x128xbf16> to vector<8x8x128xbf16>
    %c0_6 = arith.constant 0 : index
    %c0_7 = arith.constant 0 : index
    %c2 = arith.constant 2 : index
    %c0_8 = arith.constant 0 : index
    %4 = vector.load %arg3[%c0_6, %c0_7, %c2, %c0_8] : memref<1x8x10x128xbf16, #tpu.memory_space<vmem>>, vector<1x8x8x128xbf16>
    %5 = vector.shape_cast %4 : vector<1x8x8x128xbf16> to vector<8x8x128xbf16>
    %6 = tpu.concatenate %1, %3, %5 in 2 : vector<8x8x128xbf16>, vector<8x8x128xbf16>, vector<8x8x128xbf16> -> vector<8x8x384xbf16>
    %7 = vector.shape_cast %6 : vector<8x8x384xbf16> to vector<64x384xbf16>
    %c0_9 = arith.constant 0 : index
    %c0_10 = arith.constant 0 : index
    %8 = vector.load %arg5[%c0_9, %c0_10] : memref<1152x128xbf16, #tpu.memory_space<vmem>>, vector<384x128xbf16>
    %cst = arith.constant dense<0.000000e+00> : vector<64x128xf32>
    %9 = tpu.matmul %7, %8, %cst {dimension_numbers = #tpu.dot_dimension_numbers<[1], [0], [0], [1], [0, 0, 1, 1], [], []>} : vector<64x384xbf16>, vector<384x128xbf16>, vector<64x128xf32> -> vector<64x128xf32>
    %c0_11 = arith.constant 0 : index
    %c1_12 = arith.constant 1 : index
    %c0_13 = arith.constant 0 : index
    %c0_14 = arith.constant 0 : index
    %10 = vector.load %arg3[%c0_11, %c1_12, %c0_13, %c0_14] : memref<1x8x10x128xbf16, #tpu.memory_space<vmem>>, vector<1x7x8x128xbf16>
    %11 = vector.shape_cast %10 : vector<1x7x8x128xbf16> to vector<7x8x128xbf16>
    %c0_15 = arith.constant 0 : index
    %c0_16 = arith.constant 0 : index
    %c0_17 = arith.constant 0 : index
    %c0_18 = arith.constant 0 : index
    %12 = vector.load %arg4[%c0_15, %c0_16, %c0_17, %c0_18] : memref<1x2x10x128xbf16, #tpu.memory_space<vmem>>, vector<1x1x8x128xbf16>
    %13 = vector.shape_cast %12 : vector<1x1x8x128xbf16> to vector<1x8x128xbf16>
    %14 = tpu.concatenate %11, %13 in 0 : vector<7x8x128xbf16>, vector<1x8x128xbf16> -> vector<8x8x128xbf16>
    %c0_19 = arith.constant 0 : index
    %c1_20 = arith.constant 1 : index
    %c1_21 = arith.constant 1 : index
    %c0_22 = arith.constant 0 : index
    %15 = vector.load %arg3[%c0_19, %c1_20, %c1_21, %c0_22] : memref<1x8x10x128xbf16, #tpu.memory_space<vmem>>, vector<1x7x8x128xbf16>
    %16 = vector.shape_cast %15 : vector<1x7x8x128xbf16> to vector<7x8x128xbf16>
    %c0_23 = arith.constant 0 : index
    %c0_24 = arith.constant 0 : index
    %c1_25 = arith.constant 1 : index
    %c0_26 = arith.constant 0 : index
    %17 = vector.load %arg4[%c0_23, %c0_24, %c1_25, %c0_26] : memref<1x2x10x128xbf16, #tpu.memory_space<vmem>>, vector<1x1x8x128xbf16>
    %18 = vector.shape_cast %17 : vector<1x1x8x128xbf16> to vector<1x8x128xbf16>
    %19 = tpu.concatenate %16, %18 in 0 : vector<7x8x128xbf16>, vector<1x8x128xbf16> -> vector<8x8x128xbf16>
    %c0_27 = arith.constant 0 : index
    %c1_28 = arith.constant 1 : index
    %c2_29 = arith.constant 2 : index
    %c0_30 = arith.constant 0 : index
    %20 = vector.load %arg3[%c0_27, %c1_28, %c2_29, %c0_30] : memref<1x8x10x128xbf16, #tpu.memory_space<vmem>>, vector<1x7x8x128xbf16>
    %21 = vector.shape_cast %20 : vector<1x7x8x128xbf16> to vector<7x8x128xbf16>
    %c0_31 = arith.constant 0 : index
    %c0_32 = arith.constant 0 : index
    %c2_33 = arith.constant 2 : index
    %c0_34 = arith.constant 0 : index
    %22 = vector.load %arg4[%c0_31, %c0_32, %c2_33, %c0_34] : memref<1x2x10x128xbf16, #tpu.memory_space<vmem>>, vector<1x1x8x128xbf16>
    %23 = vector.shape_cast %22 : vector<1x1x8x128xbf16> to vector<1x8x128xbf16>
    %24 = tpu.concatenate %21, %23 in 0 : vector<7x8x128xbf16>, vector<1x8x128xbf16> -> vector<8x8x128xbf16>
    %25 = tpu.concatenate %14, %19, %24 in 2 : vector<8x8x128xbf16>, vector<8x8x128xbf16>, vector<8x8x128xbf16> -> vector<8x8x384xbf16>
    %26 = vector.shape_cast %25 : vector<8x8x384xbf16> to vector<64x384xbf16>
    %c384 = arith.constant 384 : index
    %c0_35 = arith.constant 0 : index
    %27 = vector.load %arg5[%c384, %c0_35] : memref<1152x128xbf16, #tpu.memory_space<vmem>>, vector<384x128xbf16>
    %cst_36 = arith.constant dense<0.000000e+00> : vector<64x128xf32>
    %28 = tpu.matmul %26, %27, %cst_36 {dimension_numbers = #tpu.dot_dimension_numbers<[1], [0], [0], [1], [0, 0, 1, 1], [], []>} : vector<64x384xbf16>, vector<384x128xbf16>, vector<64x128xf32> -> vector<64x128xf32>
    %29 = arith.addf %9, %28 : vector<64x128xf32>
    %c0_37 = arith.constant 0 : index
    %c2_38 = arith.constant 2 : index
    %c0_39 = arith.constant 0 : index
    %c0_40 = arith.constant 0 : index
    %30 = vector.load %arg3[%c0_37, %c2_38, %c0_39, %c0_40] : memref<1x8x10x128xbf16, #tpu.memory_space<vmem>>, vector<1x6x8x128xbf16>
    %31 = vector.shape_cast %30 : vector<1x6x8x128xbf16> to vector<6x8x128xbf16>
    %c0_41 = arith.constant 0 : index
    %c0_42 = arith.constant 0 : index
    %c0_43 = arith.constant 0 : index
    %c0_44 = arith.constant 0 : index
    %32 = vector.load %arg4[%c0_41, %c0_42, %c0_43, %c0_44] : memref<1x2x10x128xbf16, #tpu.memory_space<vmem>>, vector<1x2x8x128xbf16>
    %33 = vector.shape_cast %32 : vector<1x2x8x128xbf16> to vector<2x8x128xbf16>
    %34 = tpu.concatenate %31, %33 in 0 : vector<6x8x128xbf16>, vector<2x8x128xbf16> -> vector<8x8x128xbf16>
    %c0_45 = arith.constant 0 : index
    %c2_46 = arith.constant 2 : index
    %c1_47 = arith.constant 1 : index
    %c0_48 = arith.constant 0 : index
    %35 = vector.load %arg3[%c0_45, %c2_46, %c1_47, %c0_48] : memref<1x8x10x128xbf16, #tpu.memory_space<vmem>>, vector<1x6x8x128xbf16>
    %36 = vector.shape_cast %35 : vector<1x6x8x128xbf16> to vector<6x8x128xbf16>
    %c0_49 = arith.constant 0 : index
    %c0_50 = arith.constant 0 : index
    %c1_51 = arith.constant 1 : index
    %c0_52 = arith.constant 0 : index
    %37 = vector.load %arg4[%c0_49, %c0_50, %c1_51, %c0_52] : memref<1x2x10x128xbf16, #tpu.memory_space<vmem>>, vector<1x2x8x128xbf16>
    %38 = vector.shape_cast %37 : vector<1x2x8x128xbf16> to vector<2x8x128xbf16>
    %39 = tpu.concatenate %36, %38 in 0 : vector<6x8x128xbf16>, vector<2x8x128xbf16> -> vector<8x8x128xbf16>
    %c0_53 = arith.constant 0 : index
    %c2_54 = arith.constant 2 : index
    %c2_55 = arith.constant 2 : index
    %c0_56 = arith.constant 0 : index
    %40 = vector.load %arg3[%c0_53, %c2_54, %c2_55, %c0_56] : memref<1x8x10x128xbf16, #tpu.memory_space<vmem>>, vector<1x6x8x128xbf16>
    %41 = vector.shape_cast %40 : vector<1x6x8x128xbf16> to vector<6x8x128xbf16>
    %c0_57 = arith.constant 0 : index
    %c0_58 = arith.constant 0 : index
    %c2_59 = arith.constant 2 : index
    %c0_60 = arith.constant 0 : index
    %42 = vector.load %arg4[%c0_57, %c0_58, %c2_59, %c0_60] : memref<1x2x10x128xbf16, #tpu.memory_space<vmem>>, vector<1x2x8x128xbf16>
    %43 = vector.shape_cast %42 : vector<1x2x8x128xbf16> to vector<2x8x128xbf16>
    %44 = tpu.concatenate %41, %43 in 0 : vector<6x8x128xbf16>, vector<2x8x128xbf16> -> vector<8x8x128xbf16>
    %45 = tpu.concatenate %34, %39, %44 in 2 : vector<8x8x128xbf16>, vector<8x8x128xbf16>, vector<8x8x128xbf16> -> vector<8x8x384xbf16>
    %46 = vector.shape_cast %45 : vector<8x8x384xbf16> to vector<64x384xbf16>
    %c768 = arith.constant 768 : index
    %c0_61 = arith.constant 0 : index
    %47 = vector.load %arg5[%c768, %c0_61] : memref<1152x128xbf16, #tpu.memory_space<vmem>>, vector<384x128xbf16>
    %cst_62 = arith.constant dense<0.000000e+00> : vector<64x128xf32>
    %48 = tpu.matmul %46, %47, %cst_62 {dimension_numbers = #tpu.dot_dimension_numbers<[1], [0], [0], [1], [0, 0, 1, 1], [], []>} : vector<64x384xbf16>, vector<384x128xbf16>, vector<64x128xf32> -> vector<64x128xf32>
    %49 = arith.addf %29, %48 : vector<64x128xf32>
    %c0_63 = arith.constant 0 : index
    %c0_64 = arith.constant 0 : index
    %50 = vector.load %arg6[%c0_63, %c0_64] : memref<1x128xf32, #tpu.memory_space<vmem>>, vector<1x128xf32>
    %51 = vector.broadcast %50 : vector<1x128xf32> to vector<64x128xf32>
    %52 = arith.addf %49, %51 : vector<64x128xf32>
    %53 = vector.shape_cast %52 : vector<64x128xf32> to vector<8x8x128xf32>
    %54 = arith.truncf %53 : vector<8x8x128xf32> to vector<8x8x128xbf16>
    %c0_65 = arith.constant 0 : index
    %c0_66 = arith.constant 0 : index
    %c0_67 = arith.constant 0 : index
    %c0_68 = arith.constant 0 : index
    %55 = vector.load %arg7[%c0_65, %c0_66, %c0_67, %c0_68] : memref<1x8x8x128xbf16, #tpu.memory_space<vmem>>, vector<1x8x8x128xbf16>
    %56 = vector.shape_cast %55 : vector<1x8x8x128xbf16> to vector<8x8x128xbf16>
    %57 = vector.shape_cast %54 : vector<8x8x128xbf16> to vector<1x8x8x128xbf16>
    tpu.vector_store %arg7[%c0_65, %c0_66, %c0_67, %c0_68], %57 {strides = array<i32>} : memref<1x8x8x128xbf16, #tpu.memory_space<vmem>>, vector<1x8x8x128xbf16>,
    return
  }
  func.func @transform_0(%arg0: i32, %arg1: i32, %arg2: i32) -> (i32, i32, i32, i32) {
    %c0_i32 = arith.constant 0 : i32
    %c0_i32_0 = arith.constant 0 : i32
    %c0_i32_1 = arith.constant 0 : i32
    return %arg0, %arg1, %c0_i32, %c0_i32_0 : i32, i32, i32, i32
  }
  func.func @transform_1(%arg0: i32, %arg1: i32, %arg2: i32) -> (i32, i32, i32, i32) {
    %c1_i32 = arith.constant 1 : i32
    %0 = arith.addi %arg1, %c1_i32 : i32
    %c4_i32 = arith.constant 4 : i32
    %1 = arith.muli %0, %c4_i32 : i32
    %c0_i32 = arith.constant 0 : i32
    %c0_i32_0 = arith.constant 0 : i32
    %c0_i32_1 = arith.constant 0 : i32
    return %arg0, %1, %c0_i32, %c0_i32_0 : i32, i32, i32, i32
  }
  func.func @transform_2(%arg0: i32, %arg1: i32, %arg2: i32) -> (i32, i32) {
    %c0_i32 = arith.constant 0 : i32
    %c0_i32_0 = arith.constant 0 : i32
    return %c0_i32, %arg2 : i32, i32
  }
  func.func @transform_3(%arg0: i32, %arg1: i32, %arg2: i32) -> (i32, i32) {
    %c0_i32 = arith.constant 0 : i32
    %c0_i32_0 = arith.constant 0 : i32
    return %c0_i32, %arg2 : i32, i32
  }
  func.func @transform_4(%arg0: i32, %arg1: i32, %arg2: i32) -> (i32, i32, i32, i32) {
    %c0_i32 = arith.constant 0 : i32
    %c0_i32_0 = arith.constant 0 : i32
    return %arg0, %arg1, %c0_i32, %arg2 : i32, i32, i32, i32
  }
}

</mosaic_0001>

<llo_original>
// kernel: tpu_custom_call.1
$region0: #{tpu_custom_call.1}
  #allocation0 [shape = 'u32[]', space=smem, size = 0x4, offset = 0x4, fixed_abs, tag = 'smem constant byte address 0x4 - core index']
  #allocation1 [shape = 'u32[144,128]{1,0:T(1,128)}', space=vmem, size = 0x12000, scoped, tag = 'internal scratch']
  %s0 = inlined_call_operand.vmem [shape: bf16[2,10,10,128], index: 0, kind: input, shape index: {}]
  %s1 = inlined_call_operand.vmem [shape: bf16[2,10,10,128], index: 1, kind: input, shape index: {}]
  %s2 = inlined_call_operand.hbm [shape: bf16[1152,128], index: 2, kind: input, shape index: {}]
  %s3 = inlined_call_operand.vmem [shape: f32[1,128], index: 3, kind: input, shape index: {}]
  %s4 = inlined_call_operand.hbm [shape: bf16[2,8,8,128], index: 4, kind: output, shape index: {}]
  %s5 = sld [smem:[#allocation0]]
  $region53: #{tpu_custom_call.1} parent=0
    _
  %s7 = ssub.s32 1, %s5
  %s8 = scalar_select 0, %s7, %s5
  $region1: #{tpu_custom_call.1} parent=0
    #allocation2 [shape = 'u8[294912]{0}', space=vmem, size = 0x48000, scoped, tag = 'input window, operand 2, single buffered']
    #allocation3 [shape = 's32[2]{0}', space=sflag, size = 0x8, scoped, tag = 'scoped memory for tpu_custom_call.1']
    #allocation4 [shape = 's32[2]{0}', space=sflag, size = 0x8, scoped, tag = 'scoped memory for tpu_custom_call.1']
    #allocation5 [shape = 'u8[32768]{0}', space=vmem, size = 0x8000, scoped, tag = 'output window, operand 0']
    %9 = vsyncpa [#allocation3], 0
    %10 = vsyncpa [#allocation4], 0
    %s11 = scalar_lea.sflag [#allocation4], 1
    %12 = vsyncpa %s11, 0
    loop: start=0, step=1, limit=4
    $region2: #{tpu_custom_call.1} parent=1 // loop_pre_header
      _
    $region3: #{tpu_custom_call.1} parent=1 // loop_header
      %s14 = sphi 0, %s18
      %p15 = scmp.ge.s32.totalorder %s14, 4
      %s21 = sphi 0, %s40
      %s22 = sphi 0, %s36
      %s23 = sphi 0, %s32
      %s24 = sphi 0, %s21
      %s25 = sphi 0, %s22
      %s26 = sphi 0, %s23
      %s27 = sphi 0, %s24
      %s28 = sphi 0, %s25
      %s29 = sphi 0, %s26
      %s45 = sphi 0, %s47
      %s48 = sphi 0, %s45
      %s49 = sphi 0, %s48
      %s65 = sphi 0, %s49
      %s77 = sphi 0, %s79
      %s80 = sphi 0, %s77
      %s81 = sphi 0, %s80
      %s97 = sphi 0, %s81
      %s103 = sphi 0, %s105
      %s106 = sphi 0, %s103
      %s107 = sphi 0, %s106
      %s123 = sphi 0, %s107
      %s129 = sphi 0, %s131
      %s132 = sphi 0, %s129
      %s133 = sphi 0, %s132
      %s149 = sphi 0, %s133
      %s159 = sphi 0, %s161
      %s162 = sphi 0, %s159
      %s163 = sphi 0, %s162
      %s179 = sphi 0, %s163
    $region4: #{tpu_custom_call.1} parent=1 // loop_header_branch
      %17 = sbr.rel (%p15) target = $region8
    $region5: #{tpu_custom_call.1} parent=1 // loop_body
      %s19 = ssub.s32 %s14, 1
      %s20 = ssub.s32 %s14, 2
      %s30 = sadd.s32 1, %s23
      %p31 = scmp.ge.s32.totalorder %s30, 1
      %s32 = scalar_select %p31, 0, %s30
      %s33 = sadd.s32 1, %s22
      %s34 = scalar_select %p31, %s33, %s22
      %p35 = scmp.ge.s32.totalorder %s34, 1
      %s36 = scalar_select %p35, 0, %s34
      %s37 = sadd.s32 1, %s21
      %s38 = scalar_select %p35, %s37, %s21
      %p39 = scmp.ge.s32.totalorder %s38, 2
      %s40 = scalar_select %p39, 0, %s38
      %s41 = ssub.s32 %s21, %s40
      %s42 = ssub.s32 %s22, %s36
      %s43 = sor.u32 %s41, %s42
      %p44 = scmp.eq.s32.totalorder %s43, 0
      %s46 = sadd.s32 %s45, 1
      %s47 = scalar_select %p44, %s45, %s46
      %p50 = pneg %p44
      %p51 = scmp.eq.s32.totalorder %s14, 1
      %p52 = por %p50, %p51
      %p53 = scmp.ne.s32.totalorder %s45, %s48
      %p54 = scmp.eq.s32.totalorder %s14, 0
      %p55 = por %p53, %p54
      %p56 = scmp.ne.s32.totalorder %s45, %s48
      %p57 = scmp.eq.s32.totalorder %s19, 1
      %p58 = por %p56, %p57
      %p59 = scmp.ne.s32.totalorder %s48, %s49
      %p60 = scmp.eq.s32.totalorder %s19, 0
      %p61 = por %p59, %p60
      %p62 = scmp.ne.s32.totalorder %s48, %s49
      %p63 = scmp.eq.s32.totalorder %s20, 1
      %p64 = por %p62, %p63
      %p66 = scmp.ne.s32.totalorder %s49, %s65
      %p67 = scmp.eq.s32.totalorder %s20, 0
      %p68 = por %p66, %p67
      %s69 = sadd.s32 %s22, 1
      %s70 = smul.u32 %s69, 4
      %s71 = sadd.s32 %s36, 1
      %s72 = smul.u32 %s71, 4
      %s73 = ssub.s32 %s21, %s40
      %s74 = ssub.s32 %s70, %s72
      %s75 = sor.u32 %s73, %s74
      %p76 = scmp.eq.s32.totalorder %s75, 0
      %s78 = sadd.s32 %s77, 1
      %s79 = scalar_select %p76, %s77, %s78
      %p82 = pneg %p76
      %p83 = scmp.eq.s32.totalorder %s14, 1
      %p84 = por %p82, %p83
      %p85 = scmp.ne.s32.totalorder %s77, %s80
      %p86 = scmp.eq.s32.totalorder %s14, 0
      %p87 = por %p85, %p86
      %p88 = scmp.ne.s32.totalorder %s77, %s80
      %p89 = scmp.eq.s32.totalorder %s19, 1
      %p90 = por %p88, %p89
      %p91 = scmp.ne.s32.totalorder %s80, %s81
      %p92 = scmp.eq.s32.totalorder %s19, 0
      %p93 = por %p91, %p92
      %p94 = scmp.ne.s32.totalorder %s80, %s81
      %p95 = scmp.eq.s32.totalorder %s20, 1
      %p96 = por %p94, %p95
      %p98 = scmp.ne.s32.totalorder %s81, %s97
      %p99 = scmp.eq.s32.totalorder %s20, 0
      %p100 = por %p98, %p99
      %s101 = ssub.s32 %s23, %s32
      %p102 = scmp.eq.s32.totalorder %s101, 0
      %s104 = sadd.s32 %s103, 1
      %s105 = scalar_select %p102, %s103, %s104
      %p108 = pneg %p102
      %p109 = scmp.eq.s32.totalorder %s14, 1
      %p110 = por %p108, %p109
      %p111 = scmp.ne.s32.totalorder %s103, %s106
      %p112 = scmp.eq.s32.totalorder %s14, 0
      %p113 = por %p111, %p112
      %p114 = scmp.ne.s32.totalorder %s103, %s106
      %p115 = scmp.eq.s32.totalorder %s19, 1
      %p116 = por %p114, %p115
      %p117 = scmp.ne.s32.totalorder %s106, %s107
      %p118 = scmp.eq.s32.totalorder %s19, 0
      %p119 = por %p117, %p118
      %p120 = scmp.ne.s32.totalorder %s106, %s107
      %p121 = scmp.eq.s32.totalorder %s20, 1
      %p122 = por %p120, %p121
      %p124 = scmp.ne.s32.totalorder %s107, %s123
      %p125 = scmp.eq.s32.totalorder %s20, 0
      %p126 = por %p124, %p125
      %s127 = ssub.s32 %s23, %s32
      %p128 = scmp.eq.s32.totalorder %s127, 0
      %s130 = sadd.s32 %s129, 1
      %s131 = scalar_select %p128, %s129, %s130
      %p134 = pneg %p128
      %p135 = scmp.eq.s32.totalorder %s14, 1
      %p136 = por %p134, %p135
      %p137 = scmp.ne.s32.totalorder %s129, %s132
      %p138 = scmp.eq.s32.totalorder %s14, 0
      %p139 = por %p137, %p138
      %p140 = scmp.ne.s32.totalorder %s129, %s132
      %p141 = scmp.eq.s32.totalorder %s19, 1
      %p142 = por %p140, %p141
      %p143 = scmp.ne.s32.totalorder %s132, %s133
      %p144 = scmp.eq.s32.totalorder %s19, 0
      %p145 = por %p143, %p144
      %p146 = scmp.ne.s32.totalorder %s132, %s133
      %p147 = scmp.eq.s32.totalorder %s20, 1
      %p148 = por %p146, %p147
      %p150 = scmp.ne.s32.totalorder %s133, %s149
      %p151 = scmp.eq.s32.totalorder %s20, 0
      %p152 = por %p150, %p151
      %s153 = ssub.s32 %s21, %s40
      %s154 = ssub.s32 %s22, %s36
      %s155 = sor.u32 %s153, %s154
      %s156 = ssub.s32 %s23, %s32
      %s157 = sor.u32 %s155, %s156
      %p158 = scmp.eq.s32.totalorder %s157, 0
      %s160 = sadd.s32 %s159, 1
      %s161 = scalar_select %p158, %s159, %s160
      %p164 = pneg %p158
      %p165 = scmp.eq.s32.totalorder %s14, 1
      %p166 = por %p164, %p165
      %p167 = scmp.ne.s32.totalorder %s159, %s162
      %p168 = scmp.eq.s32.totalorder %s14, 0
      %p169 = por %p167, %p168
      %p170 = scmp.ne.s32.totalorder %s159, %s162
      %p171 = scmp.eq.s32.totalorder %s19, 1
      %p172 = por %p170, %p171
      %p173 = scmp.ne.s32.totalorder %s162, %s163
      %p174 = scmp.eq.s32.totalorder %s19, 0
      %p175 = por %p173, %p174
      %p176 = scmp.ne.s32.totalorder %s162, %s163
      %p177 = scmp.eq.s32.totalorder %s20, 1
      %p178 = por %p176, %p177
      %p180 = scmp.ne.s32.totalorder %s163, %s179
      %p181 = scmp.eq.s32.totalorder %s20, 0
      %p182 = por %p180, %p181
      %p183 = scmp.le.s32.totalorder 1, %s14
      %p184 = scmp.lt.s32.totalorder %s14, 3
      %p185 = pnand %p183, %p184
      %p186 = pneg %p185
      // Predicated region
      $region9: #{tpu_custom_call.1} parent=5 // pred_check
        _
      $region10: #{tpu_custom_call.1} parent=5 // pred_check_branch
        %188 = sbr.rel (%p185) target = $region12
      $region11: #{tpu_custom_call.1} parent=5 // pred_region
        %s189 = ssub.s32 %s14, 1
        // Predicated region
        $region13: #{tpu_custom_call.1} parent=11 // pred_check
          %p190 = pneg %p119
        $region14: #{tpu_custom_call.1} parent=11 // pred_check_branch
          %192 = sbr.rel (%p190) target = $region16
        $region15: #{tpu_custom_call.1} parent=11 // pred_region
          %s194 = ssub.s32 9216, 9216
          %195 = vsyncadd [#allocation3], %s194
          %s196 = smul.addr %s26, 64
          %s197 = scalar_lea.hbm %s2, %s196
          %s198 = sshll.u32 [#allocation2], 4
          %s199 = int_to_ptr.vmem [resolvable:$true] %s198
          %204 = dma.hbm_to_vmem [thread:$0]  %s197, 9216, %s199, [#allocation3], 64, 64, 4
        $region16: #{tpu_custom_call.1} parent=11 // pred_fallthru
          _
        // Predicated region
        $region17: #{tpu_custom_call.1} parent=11 // pred_check
          %p205 = pneg %p145
        $region18: #{tpu_custom_call.1} parent=11 // pred_check_branch
          %207 = sbr.rel (%p205) target = $region20
        $region19: #{tpu_custom_call.1} parent=11 // pred_region
          %p208 = scmp.lt.s32.totalorder %s26, 0
          %s209 = scalar_select %p208, %s26, 0
          %s210 = scalar_lea.vmem %s3, %s209
        $region20: #{tpu_custom_call.1} parent=11 // pred_fallthru
          _
      $region12: #{tpu_custom_call.1} parent=5 // pred_fallthru
        _
      %p211 = scmp.lt.s32.totalorder %s14, 2
      // Predicated region
      $region21: #{tpu_custom_call.1} parent=5 // pred_check
        %p212 = pneg %p211
      $region22: #{tpu_custom_call.1} parent=5 // pred_check_branch
        %214 = sbr.rel (%p212) target = $region24
      $region23: #{tpu_custom_call.1} parent=5 // pred_region
        // Predicated region
        $region25: #{tpu_custom_call.1} parent=23 // pred_check
          %p215 = pneg %p55
        $region26: #{tpu_custom_call.1} parent=23 // pred_check_branch
          %217 = sbr.rel (%p215) target = $region28
        $region27: #{tpu_custom_call.1} parent=23 // pred_region
          %s218 = smul.u32 8, %s22
          %s219 = ssub.s32 10, %s218
          %p220 = scmp.lt.s32.totalorder %s219, 8
          %s221 = scalar_select %p220, %s219, 8
          %s222 = smul.u32 64, %s221
          %s223 = smul.u32 %s222, 2
          %p224 = scmp.lt.s32.totalorder %s21, 1
          %s225 = scalar_select %p224, %s21, 1
          %p226 = scmp.lt.s32.totalorder %s218, 9
          %s227 = scalar_select %p226, %s218, 9
          %s228 = smul.addr %s227, 2
          %s229 = smul.addr %s225, 20
          %s230 = sadd.s32 %s228, %s229
          %s231 = smul.addr %s230, 4
          %s232 = scalar_lea.vmem %s0, %s231
          %s233 = smul.u32 8, %s22
          %s234 = ssub.s32 10, %s233
          %p235 = scmp.lt.s32.totalorder %s234, 8
          %s236 = scalar_select %p235, %s234, 8
          %s237 = smul.u32 64, %s236
          %s238 = smul.u32 %s237, 2
        $region28: #{tpu_custom_call.1} parent=23 // pred_fallthru
          _
        // Predicated region
        $region29: #{tpu_custom_call.1} parent=23 // pred_check
          %p239 = pneg %p87
        $region30: #{tpu_custom_call.1} parent=23 // pred_check_branch
          %241 = sbr.rel (%p239) target = $region32
        $region31: #{tpu_custom_call.1} parent=23 // pred_region
          %s242 = sadd.s32 %s22, 1
          %s243 = smul.u32 %s242, 4
          %s244 = smul.u32 2, %s243
          %p245 = scmp.lt.s32.totalorder %s21, 1
          %s246 = scalar_select %p245, %s21, 1
          %p247 = scmp.lt.s32.totalorder %s244, 9
          %s248 = scalar_select %p247, %s244, 9
          %s249 = smul.addr %s248, 2
          %s250 = smul.addr %s246, 20
          %s251 = sadd.s32 %s249, %s250
          %s252 = smul.addr %s251, 4
          %s253 = scalar_lea.vmem %s1, %s252
          %s254 = sadd.s32 %s22, 1
          %s255 = smul.u32 %s254, 4
          %s256 = smul.u32 2, %s255
        $region32: #{tpu_custom_call.1} parent=23 // pred_fallthru
          _
      $region24: #{tpu_custom_call.1} parent=5 // pred_fallthru
        _
      %p257 = scmp.le.s32.totalorder 1, %s14
      %p258 = scmp.lt.s32.totalorder %s14, 3
      %p259 = pnand %p257, %p258
      %p260 = pneg %p259
      // Predicated region
      $region33: #{tpu_custom_call.1} parent=5 // pred_check
        _
      $region34: #{tpu_custom_call.1} parent=5 // pred_check_branch
        %262 = sbr.rel (%p259) target = $region36
      $region35: #{tpu_custom_call.1} parent=5 // pred_region
        %s263 = ssub.s32 %s14, 1
        // Predicated region
        $region37: #{tpu_custom_call.1} parent=35 // pred_check
          %p264 = pneg %p119
        $region38: #{tpu_custom_call.1} parent=35 // pred_check_branch
          %266 = sbr.rel (%p264) target = $region40
        $region39: #{tpu_custom_call.1} parent=35 // pred_region
          %267 = dma.done [#allocation3], 9216
        $region40: #{tpu_custom_call.1} parent=35 // pred_fallthru
          _
        %s268 = smul.u32 8, %s25
        %s269 = ssub.s32 10, %s268
        %p270 = scmp.lt.s32.totalorder %s269, 8
        %s271 = scalar_select %p270, %s269, 8
        %s272 = smul.u32 64, %s271
        %s273 = smul.u32 %s272, 2
        %p274 = scmp.lt.s32.totalorder %s24, 1
        %s275 = scalar_select %p274, %s24, 1
        %p276 = scmp.lt.s32.totalorder %s268, 9
        %s277 = scalar_select %p276, %s268, 9
        %s278 = smul.addr %s277, 2
        %s279 = smul.addr %s275, 20
        %s280 = sadd.s32 %s278, %s279
        %s281 = smul.addr %s280, 4
        %s282 = scalar_lea.vmem %s0, %s281
        %p283 = pneg %p61
        %p284 = pneg %p58
        %s285 = sadd.s32 %s25, 1
        %s286 = smul.u32 %s285, 4
        %s287 = smul.u32 2, %s286
        %p288 = scmp.lt.s32.totalorder %s24, 1
        %s289 = scalar_select %p288, %s24, 1
        %p290 = scmp.lt.s32.totalorder %s287, 9
        %s291 = scalar_select %p290, %s287, 9
        %s292 = smul.addr %s291, 2
        %s293 = smul.addr %s289, 20
        %s294 = sadd.s32 %s292, %s293
        %s295 = smul.addr %s294, 4
        %s296 = scalar_lea.vmem %s1, %s295
        %p297 = pneg %p93
        %p298 = pneg %p90
        %p299 = pneg %p119
        %p300 = pneg %p116
        %p301 = scmp.lt.s32.totalorder %s26, 0
        %s302 = scalar_select %p301, %s26, 0
        %s303 = scalar_lea.vmem %s3, %s302
        %p304 = pneg %p145
        %p305 = pneg %p142
        %p306 = pneg %p175
        %p307 = pneg %p172
        %s308 = sand.u32 %s162, 1
        %s309 = scalar_lea.sflag [#allocation4], %s308
        %s310 = sand.u32 %s162, 1
        %s311 = smul.addr %s310, 32
        %s312 = scalar_lea.vmem [#allocation5], %s311
        %s313 = smul.u32 8, %s25
        %s314 = ssub.s32 10, %s313
        %p315 = scmp.lt.s32.totalorder %s314, 8
        %s316 = scalar_select %p315, %s314, 8
        %s317 = smul.u32 64, %s316
        %s318 = smul.u32 %s317, 2
        %p319 = scmp.lt.s32.totalorder %s24, 1
        %s320 = scalar_select %p319, %s24, 1
        %p321 = scmp.lt.s32.totalorder %s313, 9
        %s322 = scalar_select %p321, %s313, 9
        %s323 = smul.addr %s322, 2
        %s324 = smul.addr %s320, 20
        %s325 = sadd.s32 %s323, %s324
        %s326 = smul.addr %s325, 4
        %s327 = scalar_lea.vmem %s0, %s326
        %s328 = smul.u32 8, %s25
        %s329 = ssub.s32 10, %s328
        %p330 = scmp.lt.s32.totalorder %s329, 8
        %s331 = scalar_select %p330, %s329, 8
        %s332 = smul.u32 64, %s331
        %s333 = smul.u32 %s332, 2
        %s334 = sadd.s32 %s25, 1
        %s335 = smul.u32 %s334, 4
        %s336 = smul.u32 2, %s335
        %p337 = scmp.lt.s32.totalorder %s24, 1
        %s338 = scalar_select %p337, %s24, 1
        %p339 = scmp.lt.s32.totalorder %s336, 9
        %s340 = scalar_select %p339, %s336, 9
        %s341 = smul.addr %s340, 2
        %s342 = smul.addr %s338, 20
        %s343 = sadd.s32 %s341, %s342
        %s344 = smul.addr %s343, 4
        %s345 = scalar_lea.vmem %s1, %s344
        %s346 = sadd.s32 %s25, 1
        %s347 = smul.u32 %s346, 4
        %s348 = smul.u32 2, %s347
        %p349 = scmp.lt.s32.totalorder %s26, 0
        %s350 = scalar_select %p349, %s26, 0
        %s351 = scalar_lea.vmem %s3, %s350
        %s352 = smul.u32 8, %s25
        %v354 = vld [vmem:[%s327] sm:$0xf]
        %v355 = vld [vmem:[%s327 + $0x8] sm:$0xf]
        %v356 = vld [vmem:[%s327 + $0x10] sm:$0xf]
        %v357 = vld [vmem:[%s327 + $0x18] sm:$0xf]
        %v358 = vld [vmem:[%s327 + $0x20] sm:$0xf]
        %v359 = vld [vmem:[%s327 + $0x28] sm:$0xf]
        %v360 = vld [vmem:[%s327 + $0x30] sm:$0xf]
        %v361 = vld [vmem:[%s327 + $0x38] sm:$0xf]
        %v362 = vld [vmem:[%s327 + $0x4] sm:$0x1]
        %v363 = vld [vmem:[%s327 + $0xc] sm:$0x1]
        %v364 = vld [vmem:[%s327 + $0x14] sm:$0x1]
        %v365 = vld [vmem:[%s327 + $0x1c] sm:$0x1]
        %v366 = vld [vmem:[%s327 + $0x24] sm:$0x1]
        %v367 = vld [vmem:[%s327 + $0x2c] sm:$0x1]
        %v368 = vld [vmem:[%s327 + $0x34] sm:$0x1]
        %v369 = vld [vmem:[%s327 + $0x3c] sm:$0x1]
        %v370 = vld [vmem:[%s327] sm:$0xe]
        %v371 = vld [vmem:[%s327 + $0x8] sm:$0xe]
        %v372 = vld [vmem:[%s327 + $0x10] sm:$0xe]
        %v373 = vld [vmem:[%s327 + $0x18] sm:$0xe]
        %v374 = vld [vmem:[%s327 + $0x20] sm:$0xe]
        %v375 = vld [vmem:[%s327 + $0x28] sm:$0xe]
        %v376 = vld [vmem:[%s327 + $0x30] sm:$0xe]
        %v377 = vld [vmem:[%s327 + $0x38] sm:$0xe]
        %v394 = vunpack.c.l.b16 %v354
        %v395 = vunpack.c.l.b16 %v362
        %v396 = vunpack.c.l.b16 %v355
        %v397 = vunpack.c.l.b16 %v363
        %v398 = vunpack.c.l.b16 %v356
        %v399 = vunpack.c.l.b16 %v364
        %v400 = vunpack.c.l.b16 %v357
        %v401 = vunpack.c.l.b16 %v365
        %v402 = vunpack.c.l.b16 %v358
        %v403 = vunpack.c.l.b16 %v366
        %v404 = vunpack.c.l.b16 %v359
        %v405 = vunpack.c.l.b16 %v367
        %v406 = vunpack.c.l.b16 %v360
        %v407 = vunpack.c.l.b16 %v368
        %v408 = vunpack.c.l.b16 %v361
        %v409 = vunpack.c.l.b16 %v369
        %v410 = vpack.c.b16 %v395, %v394
        %v411 = vpack.c.b16 %v397, %v396
        %v412 = vpack.c.b16 %v399, %v398
        %v413 = vpack.c.b16 %v401, %v400
        %v414 = vpack.c.b16 %v403, %v402
        %v415 = vpack.c.b16 %v405, %v404
        %v416 = vpack.c.b16 %v407, %v406
        %v417 = vpack.c.b16 %v409, %v408
        %v419 = vshrl.u32 %v410, 16
        %v421 = vshll.u32 %v410, 16
        %v423 = vrot.slane %v421, 1
        %v424 = vor.u32 %v419, %v423
        %v426 = vshrl.u32 %v411, 16
        %v428 = vshll.u32 %v411, 16
        %v430 = vrot.slane %v428, 1
        %v431 = vor.u32 %v426, %v430
        %v433 = vshrl.u32 %v412, 16
        %v435 = vshll.u32 %v412, 16
        %v437 = vrot.slane %v435, 1
        %v438 = vor.u32 %v433, %v437
        %v440 = vshrl.u32 %v413, 16
        %v442 = vshll.u32 %v413, 16
        %v444 = vrot.slane %v442, 1
        %v445 = vor.u32 %v440, %v444
        %v447 = vshrl.u32 %v414, 16
        %v449 = vshll.u32 %v414, 16
        %v451 = vrot.slane %v449, 1
        %v452 = vor.u32 %v447, %v451
        %v454 = vshrl.u32 %v415, 16
        %v456 = vshll.u32 %v415, 16
        %v458 = vrot.slane %v456, 1
        %v459 = vor.u32 %v454, %v458
        %v461 = vshrl.u32 %v416, 16
        %v463 = vshll.u32 %v416, 16
        %v465 = vrot.slane %v463, 1
        %v466 = vor.u32 %v461, %v465
        %v468 = vshrl.u32 %v417, 16
        %v470 = vshll.u32 %v417, 16
        %v472 = vrot.slane %v470, 1
        %v473 = vor.u32 %v468, %v472
        %v482 = vunpack.c.l.b16 %v370
        %v483 = vunpack.c.l.b16 %v371
        %v484 = vunpack.c.l.b16 %v372
        %v485 = vunpack.c.l.b16 %v373
        %v486 = vunpack.c.l.b16 %v374
        %v487 = vunpack.c.l.b16 %v375
        %v488 = vunpack.c.l.b16 %v376
        %v489 = vunpack.c.l.b16 %v377
        %v490 = vpack.c.b16 %v395, %v482
        %v491 = vpack.c.b16 %v397, %v483
        %v492 = vpack.c.b16 %v399, %v484
        %v493 = vpack.c.b16 %v401, %v485
        %v494 = vpack.c.b16 %v403, %v486
        %v495 = vpack.c.b16 %v405, %v487
        %v496 = vpack.c.b16 %v407, %v488
        %v497 = vpack.c.b16 %v409, %v489
        %v498 = vrot.slane %v490, 1
        %v499 = vrot.slane %v491, 1
        %v500 = vrot.slane %v492, 1
        %v501 = vrot.slane %v493, 1
        %v502 = vrot.slane %v494, 1
        %v503 = vrot.slane %v495, 1
        %v504 = vrot.slane %v496, 1
        %v505 = vrot.slane %v497, 1
        %v506 = vunpack.c.l.b16 %v424
        %v507 = vunpack.c.l.b16 %v498
        %v508 = vunpack.c.l.b16 %v431
        %v509 = vunpack.c.l.b16 %v499
        %v510 = vunpack.c.l.b16 %v438
        %v511 = vunpack.c.l.b16 %v500
        %v512 = vunpack.c.l.b16 %v445
        %v513 = vunpack.c.l.b16 %v501
        %v514 = vunpack.c.l.b16 %v452
        %v515 = vunpack.c.l.b16 %v502
        %v516 = vunpack.c.l.b16 %v459
        %v517 = vunpack.c.l.b16 %v503
        %v518 = vunpack.c.l.b16 %v466
        %v519 = vunpack.c.l.b16 %v504
        %v520 = vunpack.c.l.b16 %v473
        %v521 = vunpack.c.l.b16 %v505
        %v522 = vld [vmem:[#allocation2] sm:$0xf]
        %v523 = vld [vmem:[#allocation2 + $0x4] sm:$0xf]
        %v524 = vld [vmem:[#allocation2 + $0x8] sm:$0xf]
        %v525 = vld [vmem:[#allocation2 + $0xc] sm:$0xf]
        %v526 = vld [vmem:[#allocation2 + $0x10] sm:$0xf]
        %v527 = vld [vmem:[#allocation2 + $0x14] sm:$0xf]
        %v528 = vld [vmem:[#allocation2 + $0x18] sm:$0xf]
        %v529 = vld [vmem:[#allocation2 + $0x1c] sm:$0xf]
        %v530 = vld [vmem:[#allocation2 + $0x20] sm:$0xf]
        %v531 = vld [vmem:[#allocation2 + $0x24] sm:$0xf]
        %v532 = vld [vmem:[#allocation2 + $0x28] sm:$0xf]
        %v533 = vld [vmem:[#allocation2 + $0x2c] sm:$0xf]
        %v534 = vld [vmem:[#allocation2 + $0x30] sm:$0xf]
        %v535 = vld [vmem:[#allocation2 + $0x34] sm:$0xf]
        %v536 = vld [vmem:[#allocation2 + $0x38] sm:$0xf]
        %v537 = vld [vmem:[#allocation2 + $0x3c] sm:$0xf]
        %v538 = vld [vmem:[#allocation2 + $0x40] sm:$0xf]
        %v539 = vld [vmem:[#allocation2 + $0x44] sm:$0xf]
        %v540 = vld [vmem:[#allocation2 + $0x48] sm:$0xf]
        %v541 = vld [vmem:[#allocation2 + $0x4c] sm:$0xf]
        %v542 = vld [vmem:[#allocation2 + $0x50] sm:$0xf]
        %v543 = vld [vmem:[#allocation2 + $0x54] sm:$0xf]
        %v544 = vld [vmem:[#allocation2 + $0x58] sm:$0xf]
        %v545 = vld [vmem:[#allocation2 + $0x5c] sm:$0xf]
        %v546 = vld [vmem:[#allocation2 + $0x60] sm:$0xf]
        %v547 = vld [vmem:[#allocation2 + $0x64] sm:$0xf]
        %v548 = vld [vmem:[#allocation2 + $0x68] sm:$0xf]
        %v549 = vld [vmem:[#allocation2 + $0x6c] sm:$0xf]
        %v550 = vld [vmem:[#allocation2 + $0x70] sm:$0xf]
        %v551 = vld [vmem:[#allocation2 + $0x74] sm:$0xf]
        %v552 = vld [vmem:[#allocation2 + $0x78] sm:$0xf]
        %v553 = vld [vmem:[#allocation2 + $0x7c] sm:$0xf]
        %v554 = vld [vmem:[#allocation2 + $0x80] sm:$0xf]
        %v555 = vld [vmem:[#allocation2 + $0x84] sm:$0xf]
        %v556 = vld [vmem:[#allocation2 + $0x88] sm:$0xf]
        %v557 = vld [vmem:[#allocation2 + $0x8c] sm:$0xf]
        %v558 = vld [vmem:[#allocation2 + $0x90] sm:$0xf]
        %v559 = vld [vmem:[#allocation2 + $0x94] sm:$0xf]
        %v560 = vld [vmem:[#allocation2 + $0x98] sm:$0xf]
        %v561 = vld [vmem:[#allocation2 + $0x9c] sm:$0xf]
        %v562 = vld [vmem:[#allocation2 + $0xa0] sm:$0xf]
        %v563 = vld [vmem:[#allocation2 + $0xa4] sm:$0xf]
        %v564 = vld [vmem:[#allocation2 + $0xa8] sm:$0xf]
        %v565 = vld [vmem:[#allocation2 + $0xac] sm:$0xf]
        %v566 = vld [vmem:[#allocation2 + $0xb0] sm:$0xf]
        %v567 = vld [vmem:[#allocation2 + $0xb4] sm:$0xf]
        %v568 = vld [vmem:[#allocation2 + $0xb8] sm:$0xf]
        %v569 = vld [vmem:[#allocation2 + $0xbc] sm:$0xf]
        %s570 = scalar_lea.vmem %s327, 8
        %v571 = vld [vmem:[%s570] sm:$0xf]
        %v572 = vld [vmem:[%s570 + $0x8] sm:$0xf]
        %v573 = vld [vmem:[%s570 + $0x10] sm:$0xf]
        %v574 = vld [vmem:[%s570 + $0x18] sm:$0xf]
        %v575 = vld [vmem:[%s570 + $0x20] sm:$0xf]
        %v576 = vld [vmem:[%s570 + $0x28] sm:$0xf]
        %v577 = vld [vmem:[%s570 + $0x30] sm:$0xf]
        %v578 = vld [vmem:[%s345] sm:$0xf]
        %v579 = vld [vmem:[%s570 + $0x4] sm:$0x1]
        %v580 = vld [vmem:[%s570 + $0xc] sm:$0x1]
        %v581 = vld [vmem:[%s570 + $0x14] sm:$0x1]
        %v582 = vld [vmem:[%s570 + $0x1c] sm:$0x1]
        %v583 = vld [vmem:[%s570 + $0x24] sm:$0x1]
        %v584 = vld [vmem:[%s570 + $0x2c] sm:$0x1]
        %v585 = vld [vmem:[%s570 + $0x34] sm:$0x1]
        %v586 = vld [vmem:[%s345 + $0x4] sm:$0x1]
        %v587 = vld [vmem:[%s570] sm:$0xe]
        %v588 = vld [vmem:[%s570 + $0x8] sm:$0xe]
        %v589 = vld [vmem:[%s570 + $0x10] sm:$0xe]
        %v590 = vld [vmem:[%s570 + $0x18] sm:$0xe]
        %v591 = vld [vmem:[%s570 + $0x20] sm:$0xe]
        %v592 = vld [vmem:[%s570 + $0x28] sm:$0xe]
        %v593 = vld [vmem:[%s570 + $0x30] sm:$0xe]
        %v594 = vld [vmem:[%s345] sm:$0xe]
        %v611 = vunpack.c.l.b16 %v571
        %v612 = vunpack.c.l.b16 %v579
        %v613 = vunpack.c.l.b16 %v572
        %v614 = vunpack.c.l.b16 %v580
        %v615 = vunpack.c.l.b16 %v573
        %v616 = vunpack.c.l.b16 %v581
        %v617 = vunpack.c.l.b16 %v574
        %v618 = vunpack.c.l.b16 %v582
        %v619 = vunpack.c.l.b16 %v575
        %v620 = vunpack.c.l.b16 %v583
        %v621 = vunpack.c.l.b16 %v576
        %v622 = vunpack.c.l.b16 %v584
        %v623 = vunpack.c.l.b16 %v577
        %v624 = vunpack.c.l.b16 %v585
        %v625 = vunpack.c.l.b16 %v578
        %v626 = vunpack.c.l.b16 %v586
        %v627 = vpack.c.b16 %v612, %v611
        %v628 = vpack.c.b16 %v614, %v613
        %v629 = vpack.c.b16 %v616, %v615
        %v630 = vpack.c.b16 %v618, %v617
        %v631 = vpack.c.b16 %v620, %v619
        %v632 = vpack.c.b16 %v622, %v621
        %v633 = vpack.c.b16 %v624, %v623
        %v634 = vpack.c.b16 %v626, %v625
        %v636 = vshrl.u32 %v627, 16
        %v638 = vshll.u32 %v627, 16
        %v640 = vrot.slane %v638, 1
        %v641 = vor.u32 %v636, %v640
        %v643 = vshrl.u32 %v628, 16
        %v645 = vshll.u32 %v628, 16
        %v647 = vrot.slane %v645, 1
        %v648 = vor.u32 %v643, %v647
        %v650 = vshrl.u32 %v629, 16
        %v652 = vshll.u32 %v629, 16
        %v654 = vrot.slane %v652, 1
        %v655 = vor.u32 %v650, %v654
        %v657 = vshrl.u32 %v630, 16
        %v659 = vshll.u32 %v630, 16
        %v661 = vrot.slane %v659, 1
        %v662 = vor.u32 %v657, %v661
        %v664 = vshrl.u32 %v631, 16
        %v666 = vshll.u32 %v631, 16
        %v668 = vrot.slane %v666, 1
        %v669 = vor.u32 %v664, %v668
        %v671 = vshrl.u32 %v632, 16
        %v673 = vshll.u32 %v632, 16
        %v675 = vrot.slane %v673, 1
        %v676 = vor.u32 %v671, %v675
        %v678 = vshrl.u32 %v633, 16
        %v680 = vshll.u32 %v633, 16
        %v682 = vrot.slane %v680, 1
        %v683 = vor.u32 %v678, %v682
        %v685 = vshrl.u32 %v634, 16
        %v687 = vshll.u32 %v634, 16
        %v689 = vrot.slane %v687, 1
        %v690 = vor.u32 %v685, %v689
        %v699 = vunpack.c.l.b16 %v587
        %v700 = vunpack.c.l.b16 %v588
        %v701 = vunpack.c.l.b16 %v589
        %v702 = vunpack.c.l.b16 %v590
        %v703 = vunpack.c.l.b16 %v591
        %v704 = vunpack.c.l.b16 %v592
        %v705 = vunpack.c.l.b16 %v593
        %v706 = vunpack.c.l.b16 %v594
        %v707 = vpack.c.b16 %v612, %v699
        %v708 = vpack.c.b16 %v614, %v700
        %v709 = vpack.c.b16 %v616, %v701
        %v710 = vpack.c.b16 %v618, %v702
        %v711 = vpack.c.b16 %v620, %v703
        %v712 = vpack.c.b16 %v622, %v704
        %v713 = vpack.c.b16 %v624, %v705
        %v714 = vpack.c.b16 %v626, %v706
        %v715 = vrot.slane %v707, 1
        %v716 = vrot.slane %v708, 1
        %v717 = vrot.slane %v709, 1
        %v718 = vrot.slane %v710, 1
        %v719 = vrot.slane %v711, 1
        %v720 = vrot.slane %v712, 1
        %v721 = vrot.slane %v713, 1
        %v722 = vrot.slane %v714, 1
        %v723 = vunpack.c.l.b16 %v641
        %v724 = vunpack.c.l.b16 %v715
        %v725 = vunpack.c.l.b16 %v648
        %v726 = vunpack.c.l.b16 %v716
        %v727 = vunpack.c.l.b16 %v655
        %v728 = vunpack.c.l.b16 %v717
        %v729 = vunpack.c.l.b16 %v662
        %v730 = vunpack.c.l.b16 %v718
        %v731 = vunpack.c.l.b16 %v669
        %v732 = vunpack.c.l.b16 %v719
        %v733 = vunpack.c.l.b16 %v676
        %v734 = vunpack.c.l.b16 %v720
        %v735 = vunpack.c.l.b16 %v683
        %v736 = vunpack.c.l.b16 %v721
        %v737 = vunpack.c.l.b16 %v690
        %v738 = vunpack.c.l.b16 %v722
        %v739 = vld [vmem:[#allocation2 + $0xc0] sm:$0xf]
        %v740 = vld [vmem:[#allocation2 + $0xc4] sm:$0xf]
        %v741 = vld [vmem:[#allocation2 + $0xc8] sm:$0xf]
        %v742 = vld [vmem:[#allocation2 + $0xcc] sm:$0xf]
        %v743 = vld [vmem:[#allocation2 + $0xd0] sm:$0xf]
        %v744 = vld [vmem:[#allocation2 + $0xd4] sm:$0xf]
        %v745 = vld [vmem:[#allocation2 + $0xd8] sm:$0xf]
        %v746 = vld [vmem:[#allocation2 + $0xdc] sm:$0xf]
        %v747 = vld [vmem:[#allocation2 + $0xe0] sm:$0xf]
        %v748 = vld [vmem:[#allocation2 + $0xe4] sm:$0xf]
        %v749 = vld [vmem:[#allocation2 + $0xe8] sm:$0xf]
        %v750 = vld [vmem:[#allocation2 + $0xec] sm:$0xf]
        %v751 = vld [vmem:[#allocation2 + $0xf0] sm:$0xf]
        %v752 = vld [vmem:[#allocation2 + $0xf4] sm:$0xf]
        %v753 = vld [vmem:[#allocation2 + $0xf8] sm:$0xf]
        %v754 = vld [vmem:[#allocation2 + $0xfc] sm:$0xf]
        %v755 = vld [vmem:[#allocation2 + $0x100] sm:$0xf]
        %v756 = vld [vmem:[#allocation2 + $0x104] sm:$0xf]
        %v757 = vld [vmem:[#allocation2 + $0x108] sm:$0xf]
        %v758 = vld [vmem:[#allocation2 + $0x10c] sm:$0xf]
        %v759 = vld [vmem:[#allocation2 + $0x110] sm:$0xf]
        %v760 = vld [vmem:[#allocation2 + $0x114] sm:$0xf]
        %v761 = vld [vmem:[#allocation2 + $0x118] sm:$0xf]
        %v762 = vld [vmem:[#allocation2 + $0x11c] sm:$0xf]
        %v763 = vld [vmem:[#allocation2 + $0x120] sm:$0xf]
        %v764 = vld [vmem:[#allocation2 + $0x124] sm:$0xf]
        %v765 = vld [vmem:[#allocation2 + $0x128] sm:$0xf]
        %v766 = vld [vmem:[#allocation2 + $0x12c] sm:$0xf]
        %v767 = vld [vmem:[#allocation2 + $0x130] sm:$0xf]
        %v768 = vld [vmem:[#allocation2 + $0x134] sm:$0xf]
        %v769 = vld [vmem:[#allocation2 + $0x138] sm:$0xf]
        %v770 = vld [vmem:[#allocation2 + $0x13c] sm:$0xf]
        %v771 = vld [vmem:[#allocation2 + $0x140] sm:$0xf]
        %v772 = vld [vmem:[#allocation2 + $0x144] sm:$0xf]
        %v773 = vld [vmem:[#allocation2 + $0x148] sm:$0xf]
        %v774 = vld [vmem:[#allocation2 + $0x14c] sm:$0xf]
        %v775 = vld [vmem:[#allocation2 + $0x150] sm:$0xf]
        %v776 = vld [vmem:[#allocation2 + $0x154] sm:$0xf]
        %v777 = vld [vmem:[#allocation2 + $0x158] sm:$0xf]
        %v778 = vld [vmem:[#allocation2 + $0x15c] sm:$0xf]
        %v779 = vld [vmem:[#allocation2 + $0x160] sm:$0xf]
        %v780 = vld [vmem:[#allocation2 + $0x164] sm:$0xf]
        %v781 = vld [vmem:[#allocation2 + $0x168] sm:$0xf]
        %v782 = vld [vmem:[#allocation2 + $0x16c] sm:$0xf]
        %v783 = vld [vmem:[#allocation2 + $0x170] sm:$0xf]
        %v784 = vld [vmem:[#allocation2 + $0x174] sm:$0xf]
        %v785 = vld [vmem:[#allocation2 + $0x178] sm:$0xf]
        %v786 = vld [vmem:[#allocation2 + $0x17c] sm:$0xf]
        %v787 = vpack.c.b16 %v613, %v611
        %v788 = vpack.c.b16 %v725, %v723
        %v789 = vpack.c.b16 %v726, %v724
        %v790 = vpack.c.b16 %v617, %v615
        %v791 = vpack.c.b16 %v729, %v727
        %v792 = vpack.c.b16 %v730, %v728
        %v793 = vpack.c.b16 %v621, %v619
        %v794 = vpack.c.b16 %v733, %v731
        %v795 = vpack.c.b16 %v734, %v732
        %v796 = vpack.c.b16 %v625, %v623
        %v797 = vpack.c.b16 %v737, %v735
        %v798 = vpack.c.b16 %v738, %v736
        %v859 = vunpack.c.l.b16 %v739
        %v860 = vunpack.c.l.b16 %v740
        %v861 = vunpack.c.l.b16 %v741
        %v862 = vunpack.c.l.b16 %v742
        %v863 = vunpack.c.l.b16 %v743
        %v864 = vunpack.c.l.b16 %v744
        %v865 = vunpack.c.l.b16 %v745
        %v866 = vunpack.c.l.b16 %v746
        %v867 = vunpack.c.l.b16 %v747
        %v868 = vunpack.c.l.b16 %v748
        %v869 = vunpack.c.l.b16 %v749
        %v870 = vunpack.c.l.b16 %v750
        %v871 = vunpack.c.l.b16 %v751
        %v872 = vunpack.c.l.b16 %v752
        %v873 = vunpack.c.l.b16 %v753
        %v874 = vunpack.c.l.b16 %v754
        %v875 = vunpack.c.l.b16 %v755
        %v876 = vunpack.c.l.b16 %v756
        %v877 = vunpack.c.l.b16 %v757
        %v878 = vunpack.c.l.b16 %v758
        %v879 = vunpack.c.l.b16 %v759
        %v880 = vunpack.c.l.b16 %v760
        %v881 = vunpack.c.l.b16 %v761
        %v882 = vunpack.c.l.b16 %v762
        %v883 = vunpack.c.l.b16 %v763
        %v884 = vunpack.c.l.b16 %v764
        %v885 = vunpack.c.l.b16 %v765
        %v886 = vunpack.c.l.b16 %v766
        %v887 = vunpack.c.l.b16 %v767
        %v888 = vunpack.c.l.b16 %v768
        %v889 = vunpack.c.l.b16 %v769
        %v890 = vunpack.c.l.b16 %v770
        %v891 = vunpack.c.l.b16 %v771
        %v892 = vunpack.c.l.b16 %v772
        %v893 = vunpack.c.l.b16 %v773
        %v894 = vunpack.c.l.b16 %v774
        %v895 = vunpack.c.l.b16 %v775
        %v896 = vunpack.c.l.b16 %v776
        %v897 = vunpack.c.l.b16 %v777
        %v898 = vunpack.c.l.b16 %v778
        %v899 = vunpack.c.l.b16 %v779
        %v900 = vunpack.c.l.b16 %v780
        %v901 = vunpack.c.l.b16 %v781
        %v902 = vunpack.c.l.b16 %v782
        %v903 = vunpack.c.l.b16 %v783
        %v904 = vunpack.c.l.b16 %v784
        %v905 = vunpack.c.l.b16 %v785
        %v906 = vunpack.c.l.b16 %v786
        %v907 = vpack.c.b16 %v860, %v859
        %v908 = vpack.c.b16 %v862, %v861
        %v909 = vpack.c.b16 %v864, %v863
        %v910 = vpack.c.b16 %v866, %v865
        %v911 = vpack.c.b16 %v868, %v867
        %v912 = vpack.c.b16 %v870, %v869
        %v913 = vpack.c.b16 %v872, %v871
        %v914 = vpack.c.b16 %v874, %v873
        %v915 = vpack.c.b16 %v876, %v875
        %v916 = vpack.c.b16 %v878, %v877
        %v917 = vpack.c.b16 %v880, %v879
        %v918 = vpack.c.b16 %v882, %v881
        %v919 = vpack.c.b16 %v884, %v883
        %v920 = vpack.c.b16 %v886, %v885
        %v921 = vpack.c.b16 %v888, %v887
        %v922 = vpack.c.b16 %v890, %v889
        %v923 = vpack.c.b16 %v892, %v891
        %v924 = vpack.c.b16 %v894, %v893
        %v925 = vpack.c.b16 %v896, %v895
        %v926 = vpack.c.b16 %v898, %v897
        %v927 = vpack.c.b16 %v900, %v899
        %v928 = vpack.c.b16 %v902, %v901
        %v929 = vpack.c.b16 %v904, %v903
        %v930 = vpack.c.b16 %v906, %v905
        %955 = vmatprep.subr.bf16.mxu0 0
        %956 = vmatpush1.bf16.msra.mxu0 %v907
        %957 = vmatprep.subr.bf16.mxu0 0
        %958 = vmatpush1.bf16.msra.mxu0 %v908
        %959 = vmatprep.subr.bf16.mxu0 0
        %960 = vmatpush1.bf16.msra.mxu0 %v909
        %961 = vmatprep.subr.bf16.mxu0 0
        %962 = vmatpush1.bf16.msra.mxu0 %v910
        %963 = vmatprep.subr.bf16.mxu0 0
        %964 = vmatpush1.bf16.msra.mxu0 %v911
        %965 = vmatprep.subr.bf16.mxu0 0
        %966 = vmatpush1.bf16.msra.mxu0 %v912
        %967 = vmatprep.subr.bf16.mxu0 0
        %968 = vmatpush1.bf16.msra.mxu0 %v913
        %969 = vmatprep.subr.bf16.mxu0 0
        %970 = vmatpush1.bf16.msra.mxu0 %v914
        %971 = vmatprep.subr.bf16.mxu0 0
        %972 = vmatpush1.bf16.msra.mxu0 %v915
        %973 = vmatprep.subr.bf16.mxu0 0
        %974 = vmatpush1.bf16.msra.mxu0 %v916
        %975 = vmatprep.subr.bf16.mxu0 0
        %976 = vmatpush1.bf16.msra.mxu0 %v917
        %977 = vmatprep.subr.bf16.mxu0 0
        %978 = vmatpush1.bf16.msra.mxu0 %v918
        %979 = vmatprep.subr.bf16.mxu0 0
        %980 = vmatpush1.bf16.msra.mxu0 %v919
        %981 = vmatprep.subr.bf16.mxu0 0
        %982 = vmatpush1.bf16.msra.mxu0 %v920
        %983 = vmatprep.subr.bf16.mxu0 0
        %984 = vmatpush1.bf16.msra.mxu0 %v921
        %985 = vmatprep.subr.bf16.mxu0 0
        %986 = vmatpush1.bf16.msra.mxu0 %v922
        %987 = vmatprep.mubr.bf16.mxu0 %v788
        %988 = vmatmul.mubr.bf16.gmra.mrb[0].mxu0 %v787
        %v989 = vpop.f32.mrb[0].mxu0
        %v990 = vadd.f32 0.0, %v989
        %v991 = vpop.f32.mrb[0].mxu0
        %v992 = vpop.f32.mrb[0].mxu0
        %v993 = vadd.f32 0.0, %v992
        %v994 = vpop.f32.mrb[0].mxu0
        %995 = vmatprep.mubr.bf16.mxu0 %v791
        %996 = vmatmul.mubr.bf16.gmra.mrb[0].mxu0 %v790
        %v997 = vpop.f32.mrb[0].mxu0
        %v998 = vadd.f32 0.0, %v997
        %v999 = vpop.f32.mrb[0].mxu0
        %v1000 = vpop.f32.mrb[0].mxu0
        %v1001 = vadd.f32 0.0, %v1000
        %v1002 = vpop.f32.mrb[0].mxu0
        %1003 = vmatprep.mubr.bf16.mxu0 %v794
        %1004 = vmatmul.mubr.bf16.gmra.mrb[0].mxu0 %v793
        %v1005 = vpop.f32.mrb[0].mxu0
        %v1006 = vadd.f32 0.0, %v1005
        %v1007 = vpop.f32.mrb[0].mxu0
        %v1008 = vpop.f32.mrb[0].mxu0
        %v1009 = vadd.f32 0.0, %v1008
        %v1010 = vpop.f32.mrb[0].mxu0
        %1011 = vmatprep.mubr.bf16.mxu0 %v797
        %1012 = vmatmul.mubr.bf16.gmra.mrb[0].mxu0 %v796
        %v1013 = vpop.f32.mrb[0].mxu0
        %v1014 = vadd.f32 0.0, %v1013
        %v1015 = vpop.f32.mrb[0].mxu0
        %v1016 = vpop.f32.mrb[0].mxu0
        %v1017 = vadd.f32 0.0, %v1016
        %v1018 = vpop.f32.mrb[0].mxu0
        %1019 = vdwg.mxu0
        %1020 = vmatprep.subr.bf16.mxu0 0
        %1021 = vmatpush1.bf16.msra.mxu0 %v923
        %1022 = vmatprep.subr.bf16.mxu0 0
        %1023 = vmatpush1.bf16.msra.mxu0 %v924
        %1024 = vmatprep.subr.bf16.mxu0 0
        %1025 = vmatpush1.bf16.msra.mxu0 %v925
        %1026 = vmatprep.subr.bf16.mxu0 0
        %1027 = vmatpush1.bf16.msra.mxu0 %v926
        %1028 = vmatprep.subr.bf16.mxu0 0
        %1029 = vmatpush1.bf16.msra.mxu0 %v927
        %1030 = vmatprep.subr.bf16.mxu0 0
        %1031 = vmatpush1.bf16.msra.mxu0 %v928
        %1032 = vmatprep.subr.bf16.mxu0 0
        %1033 = vmatpush1.bf16.msra.mxu0 %v929
        %1034 = vmatprep.subr.bf16.mxu0 0
        %1035 = vmatpush1.bf16.msra.mxu0 %v930
        %1036 = vmatprep.subr.bf16.mxu0 0
        %1037 = vmatpush1.bf16.msra.mxu0 0
        %1038 = vmatprep.subr.bf16.mxu0 0
        %1039 = vmatpush1.bf16.msra.mxu0 0
        %1040 = vmatprep.subr.bf16.mxu0 0
        %1041 = vmatpush1.bf16.msra.mxu0 0
        %1042 = vmatprep.subr.bf16.mxu0 0
        %1043 = vmatpush1.bf16.msra.mxu0 0
        %1044 = vmatprep.subr.bf16.mxu0 0
        %1045 = vmatpush1.bf16.msra.mxu0 0
        %1046 = vmatprep.subr.bf16.mxu0 0
        %1047 = vmatpush1.bf16.msra.mxu0 0
        %1048 = vmatprep.subr.bf16.mxu0 0
        %1049 = vmatpush1.bf16.msra.mxu0 0
        %1050 = vmatprep.subr.bf16.mxu0 0
        %1051 = vmatpush1.bf16.msra.mxu0 0
        %1052 = vmatprep.mubr.bf16.mxu0 0
        %1053 = vmatmul.mubr.bf16.gmra.mrb[0].mxu0 %v789
        %v1054 = vpop.f32.mrb[0].mxu0
        %v1055 = vadd.f32 %v990, %v1054
        %v1056 = vpop.f32.mrb[0].mxu0
        %v1057 = vpop.f32.mrb[0].mxu0
        %v1058 = vadd.f32 %v993, %v1057
        %v1059 = vpop.f32.mrb[0].mxu0
        %1060 = vmatprep.mubr.bf16.mxu0 0
        %1061 = vmatmul.mubr.bf16.gmra.mrb[0].mxu0 %v792
        %v1062 = vpop.f32.mrb[0].mxu0
        %v1063 = vadd.f32 %v998, %v1062
        %v1064 = vpop.f32.mrb[0].mxu0
        %v1065 = vpop.f32.mrb[0].mxu0
        %v1066 = vadd.f32 %v1001, %v1065
        %v1067 = vpop.f32.mrb[0].mxu0
        %1068 = vmatprep.mubr.bf16.mxu0 0
        %1069 = vmatmul.mubr.bf16.gmra.mrb[0].mxu0 %v795
        %v1070 = vpop.f32.mrb[0].mxu0
        %v1071 = vadd.f32 %v1006, %v1070
        %v1072 = vpop.f32.mrb[0].mxu0
        %v1073 = vpop.f32.mrb[0].mxu0
        %v1074 = vadd.f32 %v1009, %v1073
        %v1075 = vpop.f32.mrb[0].mxu0
        %1076 = vmatprep.mubr.bf16.mxu0 0
        %1077 = vmatmul.mubr.bf16.gmra.mrb[0].mxu0 %v798
        %v1078 = vpop.f32.mrb[0].mxu0
        %v1079 = vadd.f32 %v1014, %v1078
        %v1080 = vpop.f32.mrb[0].mxu0
        %v1081 = vpop.f32.mrb[0].mxu0
        %v1082 = vadd.f32 %v1017, %v1081
        %v1083 = vpop.f32.mrb[0].mxu0
        %1084 = vdwg.mxu0
        %v1085 = vpack.c.b16 %v396, %v394
        %v1086 = vpack.c.b16 %v508, %v506
        %v1087 = vpack.c.b16 %v509, %v507
        %v1088 = vpack.c.b16 %v400, %v398
        %v1089 = vpack.c.b16 %v512, %v510
        %v1090 = vpack.c.b16 %v513, %v511
        %v1091 = vpack.c.b16 %v404, %v402
        %v1092 = vpack.c.b16 %v516, %v514
        %v1093 = vpack.c.b16 %v517, %v515
        %v1094 = vpack.c.b16 %v408, %v406
        %v1095 = vpack.c.b16 %v520, %v518
        %v1096 = vpack.c.b16 %v521, %v519
        %v1157 = vunpack.c.l.b16 %v522
        %v1158 = vunpack.c.l.b16 %v523
        %v1159 = vunpack.c.l.b16 %v524
        %v1160 = vunpack.c.l.b16 %v525
        %v1161 = vunpack.c.l.b16 %v526
        %v1162 = vunpack.c.l.b16 %v527
        %v1163 = vunpack.c.l.b16 %v528
        %v1164 = vunpack.c.l.b16 %v529
        %v1165 = vunpack.c.l.b16 %v530
        %v1166 = vunpack.c.l.b16 %v531
        %v1167 = vunpack.c.l.b16 %v532
        %v1168 = vunpack.c.l.b16 %v533
        %v1169 = vunpack.c.l.b16 %v534
        %v1170 = vunpack.c.l.b16 %v535
        %v1171 = vunpack.c.l.b16 %v536
        %v1172 = vunpack.c.l.b16 %v537
        %v1173 = vunpack.c.l.b16 %v538
        %v1174 = vunpack.c.l.b16 %v539
        %v1175 = vunpack.c.l.b16 %v540
        %v1176 = vunpack.c.l.b16 %v541
        %v1177 = vunpack.c.l.b16 %v542
        %v1178 = vunpack.c.l.b16 %v543
        %v1179 = vunpack.c.l.b16 %v544
        %v1180 = vunpack.c.l.b16 %v545
        %v1181 = vunpack.c.l.b16 %v546
        %v1182 = vunpack.c.l.b16 %v547
        %v1183 = vunpack.c.l.b16 %v548
        %v1184 = vunpack.c.l.b16 %v549
        %v1185 = vunpack.c.l.b16 %v550
        %v1186 = vunpack.c.l.b16 %v551
        %v1187 = vunpack.c.l.b16 %v552
        %v1188 = vunpack.c.l.b16 %v553
        %v1189 = vunpack.c.l.b16 %v554
        %v1190 = vunpack.c.l.b16 %v555
        %v1191 = vunpack.c.l.b16 %v556
        %v1192 = vunpack.c.l.b16 %v557
        %v1193 = vunpack.c.l.b16 %v558
        %v1194 = vunpack.c.l.b16 %v559
        %v1195 = vunpack.c.l.b16 %v560
        %v1196 = vunpack.c.l.b16 %v561
        %v1197 = vunpack.c.l.b16 %v562
        %v1198 = vunpack.c.l.b16 %v563
        %v1199 = vunpack.c.l.b16 %v564
        %v1200 = vunpack.c.l.b16 %v565
        %v1201 = vunpack.c.l.b16 %v566
        %v1202 = vunpack.c.l.b16 %v567
        %v1203 = vunpack.c.l.b16 %v568
        %v1204 = vunpack.c.l.b16 %v569
        %v1205 = vpack.c.b16 %v1158, %v1157
        %v1206 = vpack.c.b16 %v1160, %v1159
        %v1207 = vpack.c.b16 %v1162, %v1161
        %v1208 = vpack.c.b16 %v1164, %v1163
        %v1209 = vpack.c.b16 %v1166, %v1165
        %v1210 = vpack.c.b16 %v1168, %v1167
        %v1211 = vpack.c.b16 %v1170, %v1169
        %v1212 = vpack.c.b16 %v1172, %v1171
        %v1213 = vpack.c.b16 %v1174, %v1173
        %v1214 = vpack.c.b16 %v1176, %v1175
        %v1215 = vpack.c.b16 %v1178, %v1177
        %v1216 = vpack.c.b16 %v1180, %v1179
        %v1217 = vpack.c.b16 %v1182, %v1181
        %v1218 = vpack.c.b16 %v1184, %v1183
        %v1219 = vpack.c.b16 %v1186, %v1185
        %v1220 = vpack.c.b16 %v1188, %v1187
        %v1221 = vpack.c.b16 %v1190, %v1189
        %v1222 = vpack.c.b16 %v1192, %v1191
        %v1223 = vpack.c.b16 %v1194, %v1193
        %v1224 = vpack.c.b16 %v1196, %v1195
        %v1225 = vpack.c.b16 %v1198, %v1197
        %v1226 = vpack.c.b16 %v1200, %v1199
        %v1227 = vpack.c.b16 %v1202, %v1201
        %v1228 = vpack.c.b16 %v1204, %v1203
        %1253 = vmatprep.subr.bf16.mxu0 0
        %1254 = vmatpush1.bf16.msra.mxu0 %v1205
        %1255 = vmatprep.subr.bf16.mxu0 0
        %1256 = vmatpush1.bf16.msra.mxu0 %v1206
        %1257 = vmatprep.subr.bf16.mxu0 0
        %1258 = vmatpush1.bf16.msra.mxu0 %v1207
        %1259 = vmatprep.subr.bf16.mxu0 0
        %1260 = vmatpush1.bf16.msra.mxu0 %v1208
        %1261 = vmatprep.subr.bf16.mxu0 0
        %1262 = vmatpush1.bf16.msra.mxu0 %v1209
        %1263 = vmatprep.subr.bf16.mxu0 0
        %1264 = vmatpush1.bf16.msra.mxu0 %v1210
        %1265 = vmatprep.subr.bf16.mxu0 0
        %1266 = vmatpush1.bf16.msra.mxu0 %v1211
        %1267 = vmatprep.subr.bf16.mxu0 0
        %1268 = vmatpush1.bf16.msra.mxu0 %v1212
        %1269 = vmatprep.subr.bf16.mxu0 0
        %1270 = vmatpush1.bf16.msra.mxu0 %v1213
        %1271 = vmatprep.subr.bf16.mxu0 0
        %1272 = vmatpush1.bf16.msra.mxu0 %v1214
        %1273 = vmatprep.subr.bf16.mxu0 0
        %1274 = vmatpush1.bf16.msra.mxu0 %v1215
        %1275 = vmatprep.subr.bf16.mxu0 0
        %1276 = vmatpush1.bf16.msra.mxu0 %v1216
        %1277 = vmatprep.subr.bf16.mxu0 0
        %1278 = vmatpush1.bf16.msra.mxu0 %v1217
        %1279 = vmatprep.subr.bf16.mxu0 0
        %1280 = vmatpush1.bf16.msra.mxu0 %v1218
        %1281 = vmatprep.subr.bf16.mxu0 0
        %1282 = vmatpush1.bf16.msra.mxu0 %v1219
        %1283 = vmatprep.subr.bf16.mxu0 0
        %1284 = vmatpush1.bf16.msra.mxu0 %v1220
        %1285 = vmatprep.mubr.bf16.mxu0 %v1086
        %1286 = vmatmul.mubr.bf16.gmra.mrb[0].mxu0 %v1085
        %v1287 = vpop.f32.mrb[0].mxu0
        %v1288 = vadd.f32 %v1055, %v1287
        %v1289 = vpop.f32.mrb[0].mxu0
        %v1290 = vpop.f32.mrb[0].mxu0
        %v1291 = vadd.f32 %v1058, %v1290
        %v1292 = vpop.f32.mrb[0].mxu0
        %1293 = vmatprep.mubr.bf16.mxu0 %v1089
        %1294 = vmatmul.mubr.bf16.gmra.mrb[0].mxu0 %v1088
        %v1295 = vpop.f32.mrb[0].mxu0
        %v1296 = vadd.f32 %v1063, %v1295
        %v1297 = vpop.f32.mrb[0].mxu0
        %v1298 = vpop.f32.mrb[0].mxu0
        %v1299 = vadd.f32 %v1066, %v1298
        %v1300 = vpop.f32.mrb[0].mxu0
        %1301 = vmatprep.mubr.bf16.mxu0 %v1092
        %1302 = vmatmul.mubr.bf16.gmra.mrb[0].mxu0 %v1091
        %v1303 = vpop.f32.mrb[0].mxu0
        %v1304 = vadd.f32 %v1071, %v1303
        %v1305 = vpop.f32.mrb[0].mxu0
        %v1306 = vpop.f32.mrb[0].mxu0
        %v1307 = vadd.f32 %v1074, %v1306
        %v1308 = vpop.f32.mrb[0].mxu0
        %1309 = vmatprep.mubr.bf16.mxu0 %v1095
        %1310 = vmatmul.mubr.bf16.gmra.mrb[0].mxu0 %v1094
        %v1311 = vpop.f32.mrb[0].mxu0
        %v1312 = vadd.f32 %v1079, %v1311
        %v1313 = vpop.f32.mrb[0].mxu0
        %v1314 = vpop.f32.mrb[0].mxu0
        %v1315 = vadd.f32 %v1082, %v1314
        %v1316 = vpop.f32.mrb[0].mxu0
        %1317 = vdwg.mxu0
        %1318 = vmatprep.subr.bf16.mxu0 0
        %1319 = vmatpush1.bf16.msra.mxu0 %v1221
        %1320 = vmatprep.subr.bf16.mxu0 0
        %1321 = vmatpush1.bf16.msra.mxu0 %v1222
        %1322 = vmatprep.subr.bf16.mxu0 0
        %1323 = vmatpush1.bf16.msra.mxu0 %v1223
        %1324 = vmatprep.subr.bf16.mxu0 0
        %1325 = vmatpush1.bf16.msra.mxu0 %v1224
        %1326 = vmatprep.subr.bf16.mxu0 0
        %1327 = vmatpush1.bf16.msra.mxu0 %v1225
        %1328 = vmatprep.subr.bf16.mxu0 0
        %1329 = vmatpush1.bf16.msra.mxu0 %v1226
        %1330 = vmatprep.subr.bf16.mxu0 0
        %1331 = vmatpush1.bf16.msra.mxu0 %v1227
        %1332 = vmatprep.subr.bf16.mxu0 0
        %1333 = vmatpush1.bf16.msra.mxu0 %v1228
        %1334 = vmatprep.subr.bf16.mxu0 0
        %1335 = vmatpush1.bf16.msra.mxu0 0
        %1336 = vmatprep.subr.bf16.mxu0 0
        %1337 = vmatpush1.bf16.msra.mxu0 0
        %1338 = vmatprep.subr.bf16.mxu0 0
        %1339 = vmatpush1.bf16.msra.mxu0 0
        %1340 = vmatprep.subr.bf16.mxu0 0
        %1341 = vmatpush1.bf16.msra.mxu0 0
        %1342 = vmatprep.subr.bf16.mxu0 0
        %1343 = vmatpush1.bf16.msra.mxu0 0
        %1344 = vmatprep.subr.bf16.mxu0 0
        %1345 = vmatpush1.bf16.msra.mxu0 0
        %1346 = vmatprep.subr.bf16.mxu0 0
        %1347 = vmatpush1.bf16.msra.mxu0 0
        %1348 = vmatprep.subr.bf16.mxu0 0
        %1349 = vmatpush1.bf16.msra.mxu0 0
        %1350 = vmatprep.mubr.bf16.mxu0 0
        %1351 = vmatmul.mubr.bf16.gmra.mrb[0].mxu0 %v1087
        %v1352 = vpop.f32.mrb[0].mxu0
        %v1353 = vadd.f32 %v1288, %v1352
        %v1354 = vpop.f32.mrb[0].mxu0
        %v1355 = vpop.f32.mrb[0].mxu0
        %v1356 = vadd.f32 %v1291, %v1355
        %v1357 = vpop.f32.mrb[0].mxu0
        %1358 = vmatprep.mubr.bf16.mxu0 0
        %1359 = vmatmul.mubr.bf16.gmra.mrb[0].mxu0 %v1090
        %v1360 = vpop.f32.mrb[0].mxu0
        %v1361 = vadd.f32 %v1296, %v1360
        %v1362 = vpop.f32.mrb[0].mxu0
        %v1363 = vpop.f32.mrb[0].mxu0
        %v1364 = vadd.f32 %v1299, %v1363
        %v1365 = vpop.f32.mrb[0].mxu0
        %1366 = vmatprep.mubr.bf16.mxu0 0
        %1367 = vmatmul.mubr.bf16.gmra.mrb[0].mxu0 %v1093
        %v1368 = vpop.f32.mrb[0].mxu0
        %v1369 = vadd.f32 %v1304, %v1368
        %v1370 = vpop.f32.mrb[0].mxu0
        %v1371 = vpop.f32.mrb[0].mxu0
        %v1372 = vadd.f32 %v1307, %v1371
        %v1373 = vpop.f32.mrb[0].mxu0
        %1374 = vmatprep.mubr.bf16.mxu0 0
        %1375 = vmatmul.mubr.bf16.gmra.mrb[0].mxu0 %v1096
        %v1376 = vpop.f32.mrb[0].mxu0
        %v1377 = vadd.f32 %v1312, %v1376
        %v1378 = vpop.f32.mrb[0].mxu0
        %v1379 = vpop.f32.mrb[0].mxu0
        %v1380 = vadd.f32 %v1315, %v1379
        %v1381 = vpop.f32.mrb[0].mxu0
        %1382 = vdwg.mxu0
        %s1383 = scalar_lea.vmem %s327, 16
        %v1384 = vld [vmem:[%s1383] sm:$0xf]
        %v1385 = vld [vmem:[%s1383 + $0x8] sm:$0xf]
        %v1386 = vld [vmem:[%s1383 + $0x10] sm:$0xf]
        %v1387 = vld [vmem:[%s1383 + $0x18] sm:$0xf]
        %v1388 = vld [vmem:[%s1383 + $0x20] sm:$0xf]
        %v1389 = vld [vmem:[%s1383 + $0x28] sm:$0xf]
        %v1390 = vld [vmem:[%s345] sm:$0xf]
        %v1391 = vld [vmem:[%s345 + $0x8] sm:$0xf]
        %v1392 = vld [vmem:[%s1383 + $0x4] sm:$0x1]
        %v1393 = vld [vmem:[%s1383 + $0xc] sm:$0x1]
        %v1394 = vld [vmem:[%s1383 + $0x14] sm:$0x1]
        %v1395 = vld [vmem:[%s1383 + $0x1c] sm:$0x1]
        %v1396 = vld [vmem:[%s1383 + $0x24] sm:$0x1]
        %v1397 = vld [vmem:[%s1383 + $0x2c] sm:$0x1]
        %v1398 = vld [vmem:[%s345 + $0x4] sm:$0x1]
        %v1399 = vld [vmem:[%s345 + $0xc] sm:$0x1]
        %v1400 = vld [vmem:[%s1383] sm:$0xe]
        %v1401 = vld [vmem:[%s1383 + $0x8] sm:$0xe]
        %v1402 = vld [vmem:[%s1383 + $0x10] sm:$0xe]
        %v1403 = vld [vmem:[%s1383 + $0x18] sm:$0xe]
        %v1404 = vld [vmem:[%s1383 + $0x20] sm:$0xe]
        %v1405 = vld [vmem:[%s1383 + $0x28] sm:$0xe]
        %v1406 = vld [vmem:[%s345] sm:$0xe]
        %v1407 = vld [vmem:[%s345 + $0x8] sm:$0xe]
        %v1424 = vunpack.c.l.b16 %v1384
        %v1425 = vunpack.c.l.b16 %v1392
        %v1426 = vunpack.c.l.b16 %v1385
        %v1427 = vunpack.c.l.b16 %v1393
        %v1428 = vunpack.c.l.b16 %v1386
        %v1429 = vunpack.c.l.b16 %v1394
        %v1430 = vunpack.c.l.b16 %v1387
        %v1431 = vunpack.c.l.b16 %v1395
        %v1432 = vunpack.c.l.b16 %v1388
        %v1433 = vunpack.c.l.b16 %v1396
        %v1434 = vunpack.c.l.b16 %v1389
        %v1435 = vunpack.c.l.b16 %v1397
        %v1436 = vunpack.c.l.b16 %v1390
        %v1437 = vunpack.c.l.b16 %v1398
        %v1438 = vunpack.c.l.b16 %v1391
        %v1439 = vunpack.c.l.b16 %v1399
        %v1440 = vpack.c.b16 %v1425, %v1424
        %v1441 = vpack.c.b16 %v1427, %v1426
        %v1442 = vpack.c.b16 %v1429, %v1428
        %v1443 = vpack.c.b16 %v1431, %v1430
        %v1444 = vpack.c.b16 %v1433, %v1432
        %v1445 = vpack.c.b16 %v1435, %v1434
        %v1446 = vpack.c.b16 %v1437, %v1436
        %v1447 = vpack.c.b16 %v1439, %v1438
        %v1449 = vshrl.u32 %v1440, 16
        %v1451 = vshll.u32 %v1440, 16
        %v1453 = vrot.slane %v1451, 1
        %v1454 = vor.u32 %v1449, %v1453
        %v1456 = vshrl.u32 %v1441, 16
        %v1458 = vshll.u32 %v1441, 16
        %v1460 = vrot.slane %v1458, 1
        %v1461 = vor.u32 %v1456, %v1460
        %v1463 = vshrl.u32 %v1442, 16
        %v1465 = vshll.u32 %v1442, 16
        %v1467 = vrot.slane %v1465, 1
        %v1468 = vor.u32 %v1463, %v1467
        %v1470 = vshrl.u32 %v1443, 16
        %v1472 = vshll.u32 %v1443, 16
        %v1474 = vrot.slane %v1472, 1
        %v1475 = vor.u32 %v1470, %v1474
        %v1477 = vshrl.u32 %v1444, 16
        %v1479 = vshll.u32 %v1444, 16
        %v1481 = vrot.slane %v1479, 1
        %v1482 = vor.u32 %v1477, %v1481
        %v1484 = vshrl.u32 %v1445, 16
        %v1486 = vshll.u32 %v1445, 16
        %v1488 = vrot.slane %v1486, 1
        %v1489 = vor.u32 %v1484, %v1488
        %v1491 = vshrl.u32 %v1446, 16
        %v1493 = vshll.u32 %v1446, 16
        %v1495 = vrot.slane %v1493, 1
        %v1496 = vor.u32 %v1491, %v1495
        %v1498 = vshrl.u32 %v1447, 16
        %v1500 = vshll.u32 %v1447, 16
        %v1502 = vrot.slane %v1500, 1
        %v1503 = vor.u32 %v1498, %v1502
        %v1512 = vunpack.c.l.b16 %v1400
        %v1513 = vunpack.c.l.b16 %v1401
        %v1514 = vunpack.c.l.b16 %v1402
        %v1515 = vunpack.c.l.b16 %v1403
        %v1516 = vunpack.c.l.b16 %v1404
        %v1517 = vunpack.c.l.b16 %v1405
        %v1518 = vunpack.c.l.b16 %v1406
        %v1519 = vunpack.c.l.b16 %v1407
        %v1520 = vpack.c.b16 %v1425, %v1512
        %v1521 = vpack.c.b16 %v1427, %v1513
        %v1522 = vpack.c.b16 %v1429, %v1514
        %v1523 = vpack.c.b16 %v1431, %v1515
        %v1524 = vpack.c.b16 %v1433, %v1516
        %v1525 = vpack.c.b16 %v1435, %v1517
        %v1526 = vpack.c.b16 %v1437, %v1518
        %v1527 = vpack.c.b16 %v1439, %v1519
        %v1528 = vrot.slane %v1520, 1
        %v1529 = vrot.slane %v1521, 1
        %v1530 = vrot.slane %v1522, 1
        %v1531 = vrot.slane %v1523, 1
        %v1532 = vrot.slane %v1524, 1
        %v1533 = vrot.slane %v1525, 1
        %v1534 = vrot.slane %v1526, 1
        %v1535 = vrot.slane %v1527, 1
        %v1536 = vunpack.c.l.b16 %v1454
        %v1537 = vunpack.c.l.b16 %v1528
        %v1538 = vunpack.c.l.b16 %v1461
        %v1539 = vunpack.c.l.b16 %v1529
        %v1540 = vunpack.c.l.b16 %v1468
        %v1541 = vunpack.c.l.b16 %v1530
        %v1542 = vunpack.c.l.b16 %v1475
        %v1543 = vunpack.c.l.b16 %v1531
        %v1544 = vunpack.c.l.b16 %v1482
        %v1545 = vunpack.c.l.b16 %v1532
        %v1546 = vunpack.c.l.b16 %v1489
        %v1547 = vunpack.c.l.b16 %v1533
        %v1548 = vunpack.c.l.b16 %v1496
        %v1549 = vunpack.c.l.b16 %v1534
        %v1550 = vunpack.c.l.b16 %v1503
        %v1551 = vunpack.c.l.b16 %v1535
        %v1552 = vld [vmem:[#allocation2 + $0x180] sm:$0xf]
        %v1553 = vld [vmem:[#allocation2 + $0x184] sm:$0xf]
        %v1554 = vld [vmem:[#allocation2 + $0x188] sm:$0xf]
        %v1555 = vld [vmem:[#allocation2 + $0x18c] sm:$0xf]
        %v1556 = vld [vmem:[#allocation2 + $0x190] sm:$0xf]
        %v1557 = vld [vmem:[#allocation2 + $0x194] sm:$0xf]
        %v1558 = vld [vmem:[#allocation2 + $0x198] sm:$0xf]
        %v1559 = vld [vmem:[#allocation2 + $0x19c] sm:$0xf]
        %v1560 = vld [vmem:[#allocation2 + $0x1a0] sm:$0xf]
        %v1561 = vld [vmem:[#allocation2 + $0x1a4] sm:$0xf]
        %v1562 = vld [vmem:[#allocation2 + $0x1a8] sm:$0xf]
        %v1563 = vld [vmem:[#allocation2 + $0x1ac] sm:$0xf]
        %v1564 = vld [vmem:[#allocation2 + $0x1b0] sm:$0xf]
        %v1565 = vld [vmem:[#allocation2 + $0x1b4] sm:$0xf]
        %v1566 = vld [vmem:[#allocation2 + $0x1b8] sm:$0xf]
        %v1567 = vld [vmem:[#allocation2 + $0x1bc] sm:$0xf]
        %v1568 = vld [vmem:[#allocation2 + $0x1c0] sm:$0xf]
        %v1569 = vld [vmem:[#allocation2 + $0x1c4] sm:$0xf]
        %v1570 = vld [vmem:[#allocation2 + $0x1c8] sm:$0xf]
        %v1571 = vld [vmem:[#allocation2 + $0x1cc] sm:$0xf]
        %v1572 = vld [vmem:[#allocation2 + $0x1d0] sm:$0xf]
        %v1573 = vld [vmem:[#allocation2 + $0x1d4] sm:$0xf]
        %v1574 = vld [vmem:[#allocation2 + $0x1d8] sm:$0xf]
        %v1575 = vld [vmem:[#allocation2 + $0x1dc] sm:$0xf]
        %v1576 = vld [vmem:[#allocation2 + $0x1e0] sm:$0xf]
        %v1577 = vld [vmem:[#allocation2 + $0x1e4] sm:$0xf]
        %v1578 = vld [vmem:[#allocation2 + $0x1e8] sm:$0xf]
        %v1579 = vld [vmem:[#allocation2 + $0x1ec] sm:$0xf]
        %v1580 = vld [vmem:[#allocation2 + $0x1f0] sm:$0xf]
        %v1581 = vld [vmem:[#allocation2 + $0x1f4] sm:$0xf]
        %v1582 = vld [vmem:[#allocation2 + $0x1f8] sm:$0xf]
        %v1583 = vld [vmem:[#allocation2 + $0x1fc] sm:$0xf]
        %v1584 = vld [vmem:[#allocation2 + $0x200] sm:$0xf]
        %v1585 = vld [vmem:[#allocation2 + $0x204] sm:$0xf]
        %v1586 = vld [vmem:[#allocation2 + $0x208] sm:$0xf]
        %v1587 = vld [vmem:[#allocation2 + $0x20c] sm:$0xf]
        %v1588 = vld [vmem:[#allocation2 + $0x210] sm:$0xf]
        %v1589 = vld [vmem:[#allocation2 + $0x214] sm:$0xf]
        %v1590 = vld [vmem:[#allocation2 + $0x218] sm:$0xf]
        %v1591 = vld [vmem:[#allocation2 + $0x21c] sm:$0xf]
        %v1592 = vld [vmem:[#allocation2 + $0x220] sm:$0xf]
        %v1593 = vld [vmem:[#allocation2 + $0x224] sm:$0xf]
        %v1594 = vld [vmem:[#allocation2 + $0x228] sm:$0xf]
        %v1595 = vld [vmem:[#allocation2 + $0x22c] sm:$0xf]
        %v1596 = vld [vmem:[#allocation2 + $0x230] sm:$0xf]
        %v1597 = vld [vmem:[#allocation2 + $0x234] sm:$0xf]
        %v1598 = vld [vmem:[#allocation2 + $0x238] sm:$0xf]
        %v1599 = vld [vmem:[#allocation2 + $0x23c] sm:$0xf]
        %v1600 = vpack.c.b16 %v1426, %v1424
        %v1601 = vpack.c.b16 %v1538, %v1536
        %v1602 = vpack.c.b16 %v1539, %v1537
        %v1603 = vpack.c.b16 %v1430, %v1428
        %v1604 = vpack.c.b16 %v1542, %v1540
        %v1605 = vpack.c.b16 %v1543, %v1541
        %v1606 = vpack.c.b16 %v1434, %v1432
        %v1607 = vpack.c.b16 %v1546, %v1544
        %v1608 = vpack.c.b16 %v1547, %v1545
        %v1609 = vpack.c.b16 %v1438, %v1436
        %v1610 = vpack.c.b16 %v1550, %v1548
        %v1611 = vpack.c.b16 %v1551, %v1549
        %v1672 = vunpack.c.l.b16 %v1552
        %v1673 = vunpack.c.l.b16 %v1553
        %v1674 = vunpack.c.l.b16 %v1554
        %v1675 = vunpack.c.l.b16 %v1555
        %v1676 = vunpack.c.l.b16 %v1556
        %v1677 = vunpack.c.l.b16 %v1557
        %v1678 = vunpack.c.l.b16 %v1558
        %v1679 = vunpack.c.l.b16 %v1559
        %v1680 = vunpack.c.l.b16 %v1560
        %v1681 = vunpack.c.l.b16 %v1561
        %v1682 = vunpack.c.l.b16 %v1562
        %v1683 = vunpack.c.l.b16 %v1563
        %v1684 = vunpack.c.l.b16 %v1564
        %v1685 = vunpack.c.l.b16 %v1565
        %v1686 = vunpack.c.l.b16 %v1566
        %v1687 = vunpack.c.l.b16 %v1567
        %v1688 = vunpack.c.l.b16 %v1568
        %v1689 = vunpack.c.l.b16 %v1569
        %v1690 = vunpack.c.l.b16 %v1570
        %v1691 = vunpack.c.l.b16 %v1571
        %v1692 = vunpack.c.l.b16 %v1572
        %v1693 = vunpack.c.l.b16 %v1573
        %v1694 = vunpack.c.l.b16 %v1574
        %v1695 = vunpack.c.l.b16 %v1575
        %v1696 = vunpack.c.l.b16 %v1576
        %v1697 = vunpack.c.l.b16 %v1577
        %v1698 = vunpack.c.l.b16 %v1578
        %v1699 = vunpack.c.l.b16 %v1579
        %v1700 = vunpack.c.l.b16 %v1580
        %v1701 = vunpack.c.l.b16 %v1581
        %v1702 = vunpack.c.l.b16 %v1582
        %v1703 = vunpack.c.l.b16 %v1583
        %v1704 = vunpack.c.l.b16 %v1584
        %v1705 = vunpack.c.l.b16 %v1585
        %v1706 = vunpack.c.l.b16 %v1586
        %v1707 = vunpack.c.l.b16 %v1587
        %v1708 = vunpack.c.l.b16 %v1588
        %v1709 = vunpack.c.l.b16 %v1589
        %v1710 = vunpack.c.l.b16 %v1590
        %v1711 = vunpack.c.l.b16 %v1591
        %v1712 = vunpack.c.l.b16 %v1592
        %v1713 = vunpack.c.l.b16 %v1593
        %v1714 = vunpack.c.l.b16 %v1594
        %v1715 = vunpack.c.l.b16 %v1595
        %v1716 = vunpack.c.l.b16 %v1596
        %v1717 = vunpack.c.l.b16 %v1597
        %v1718 = vunpack.c.l.b16 %v1598
        %v1719 = vunpack.c.l.b16 %v1599
        %v1720 = vpack.c.b16 %v1673, %v1672
        %v1721 = vpack.c.b16 %v1675, %v1674
        %v1722 = vpack.c.b16 %v1677, %v1676
        %v1723 = vpack.c.b16 %v1679, %v1678
        %v1724 = vpack.c.b16 %v1681, %v1680
        %v1725 = vpack.c.b16 %v1683, %v1682
        %v1726 = vpack.c.b16 %v1685, %v1684
        %v1727 = vpack.c.b16 %v1687, %v1686
        %v1728 = vpack.c.b16 %v1689, %v1688
        %v1729 = vpack.c.b16 %v1691, %v1690
        %v1730 = vpack.c.b16 %v1693, %v1692
        %v1731 = vpack.c.b16 %v1695, %v1694
        %v1732 = vpack.c.b16 %v1697, %v1696
        %v1733 = vpack.c.b16 %v1699, %v1698
        %v1734 = vpack.c.b16 %v1701, %v1700
        %v1735 = vpack.c.b16 %v1703, %v1702
        %v1736 = vpack.c.b16 %v1705, %v1704
        %v1737 = vpack.c.b16 %v1707, %v1706
        %v1738 = vpack.c.b16 %v1709, %v1708
        %v1739 = vpack.c.b16 %v1711, %v1710
        %v1740 = vpack.c.b16 %v1713, %v1712
        %v1741 = vpack.c.b16 %v1715, %v1714
        %v1742 = vpack.c.b16 %v1717, %v1716
        %v1743 = vpack.c.b16 %v1719, %v1718
        %1768 = vmatprep.subr.bf16.mxu0 0
        %1769 = vmatpush1.bf16.msra.mxu0 %v1720
        %1770 = vmatprep.subr.bf16.mxu0 0
        %1771 = vmatpush1.bf16.msra.mxu0 %v1721
        %1772 = vmatprep.subr.bf16.mxu0 0
        %1773 = vmatpush1.bf16.msra.mxu0 %v1722
        %1774 = vmatprep.subr.bf16.mxu0 0
        %1775 = vmatpush1.bf16.msra.mxu0 %v1723
        %1776 = vmatprep.subr.bf16.mxu0 0
        %1777 = vmatpush1.bf16.msra.mxu0 %v1724
        %1778 = vmatprep.subr.bf16.mxu0 0
        %1779 = vmatpush1.bf16.msra.mxu0 %v1725
        %1780 = vmatprep.subr.bf16.mxu0 0
        %1781 = vmatpush1.bf16.msra.mxu0 %v1726
        %1782 = vmatprep.subr.bf16.mxu0 0
        %1783 = vmatpush1.bf16.msra.mxu0 %v1727
        %1784 = vmatprep.subr.bf16.mxu0 0
        %1785 = vmatpush1.bf16.msra.mxu0 %v1728
        %1786 = vmatprep.subr.bf16.mxu0 0
        %1787 = vmatpush1.bf16.msra.mxu0 %v1729
        %1788 = vmatprep.subr.bf16.mxu0 0
        %1789 = vmatpush1.bf16.msra.mxu0 %v1730
        %1790 = vmatprep.subr.bf16.mxu0 0
        %1791 = vmatpush1.bf16.msra.mxu0 %v1731
        %1792 = vmatprep.subr.bf16.mxu0 0
        %1793 = vmatpush1.bf16.msra.mxu0 %v1732
        %1794 = vmatprep.subr.bf16.mxu0 0
        %1795 = vmatpush1.bf16.msra.mxu0 %v1733
        %1796 = vmatprep.subr.bf16.mxu0 0
        %1797 = vmatpush1.bf16.msra.mxu0 %v1734
        %1798 = vmatprep.subr.bf16.mxu0 0
        %1799 = vmatpush1.bf16.msra.mxu0 %v1735
        %1800 = vmatprep.mubr.bf16.mxu0 %v1601
        %1801 = vmatmul.mubr.bf16.gmra.mrb[0].mxu0 %v1600
        %v1802 = vpop.f32.mrb[0].mxu0
        %v1803 = vadd.f32 0.0, %v1802
        %v1804 = vpop.f32.mrb[0].mxu0
        %v1805 = vpop.f32.mrb[0].mxu0
        %v1806 = vadd.f32 0.0, %v1805
        %v1807 = vpop.f32.mrb[0].mxu0
        %1808 = vmatprep.mubr.bf16.mxu0 %v1604
        %1809 = vmatmul.mubr.bf16.gmra.mrb[0].mxu0 %v1603
        %v1810 = vpop.f32.mrb[0].mxu0
        %v1811 = vadd.f32 0.0, %v1810
        %v1812 = vpop.f32.mrb[0].mxu0
        %v1813 = vpop.f32.mrb[0].mxu0
        %v1814 = vadd.f32 0.0, %v1813
        %v1815 = vpop.f32.mrb[0].mxu0
        %1816 = vmatprep.mubr.bf16.mxu0 %v1607
        %1817 = vmatmul.mubr.bf16.gmra.mrb[0].mxu0 %v1606
        %v1818 = vpop.f32.mrb[0].mxu0
        %v1819 = vadd.f32 0.0, %v1818
        %v1820 = vpop.f32.mrb[0].mxu0
        %v1821 = vpop.f32.mrb[0].mxu0
        %v1822 = vadd.f32 0.0, %v1821
        %v1823 = vpop.f32.mrb[0].mxu0
        %1824 = vmatprep.mubr.bf16.mxu0 %v1610
        %1825 = vmatmul.mubr.bf16.gmra.mrb[0].mxu0 %v1609
        %v1826 = vpop.f32.mrb[0].mxu0
        %v1827 = vadd.f32 0.0, %v1826
        %v1828 = vpop.f32.mrb[0].mxu0
        %v1829 = vpop.f32.mrb[0].mxu0
        %v1830 = vadd.f32 0.0, %v1829
        %v1831 = vpop.f32.mrb[0].mxu0
        %1832 = vdwg.mxu0
        %1833 = vmatprep.subr.bf16.mxu0 0
        %1834 = vmatpush1.bf16.msra.mxu0 %v1736
        %1835 = vmatprep.subr.bf16.mxu0 0
        %1836 = vmatpush1.bf16.msra.mxu0 %v1737
        %1837 = vmatprep.subr.bf16.mxu0 0
        %1838 = vmatpush1.bf16.msra.mxu0 %v1738
        %1839 = vmatprep.subr.bf16.mxu0 0
        %1840 = vmatpush1.bf16.msra.mxu0 %v1739
        %1841 = vmatprep.subr.bf16.mxu0 0
        %1842 = vmatpush1.bf16.msra.mxu0 %v1740
        %1843 = vmatprep.subr.bf16.mxu0 0
        %1844 = vmatpush1.bf16.msra.mxu0 %v1741
        %1845 = vmatprep.subr.bf16.mxu0 0
        %1846 = vmatpush1.bf16.msra.mxu0 %v1742
        %1847 = vmatprep.subr.bf16.mxu0 0
        %1848 = vmatpush1.bf16.msra.mxu0 %v1743
        %1849 = vmatprep.subr.bf16.mxu0 0
        %1850 = vmatpush1.bf16.msra.mxu0 0
        %1851 = vmatprep.subr.bf16.mxu0 0
        %1852 = vmatpush1.bf16.msra.mxu0 0
        %1853 = vmatprep.subr.bf16.mxu0 0
        %1854 = vmatpush1.bf16.msra.mxu0 0
        %1855 = vmatprep.subr.bf16.mxu0 0
        %1856 = vmatpush1.bf16.msra.mxu0 0
        %1857 = vmatprep.subr.bf16.mxu0 0
        %1858 = vmatpush1.bf16.msra.mxu0 0
        %1859 = vmatprep.subr.bf16.mxu0 0
        %1860 = vmatpush1.bf16.msra.mxu0 0
        %1861 = vmatprep.subr.bf16.mxu0 0
        %1862 = vmatpush1.bf16.msra.mxu0 0
        %1863 = vmatprep.subr.bf16.mxu0 0
        %1864 = vmatpush1.bf16.msra.mxu0 0
        %1865 = vmatprep.mubr.bf16.mxu0 0
        %1866 = vmatmul.mubr.bf16.gmra.mrb[0].mxu0 %v1602
        %v1867 = vpop.f32.mrb[0].mxu0
        %v1868 = vadd.f32 %v1803, %v1867
        %v1869 = vpop.f32.mrb[0].mxu0
        %v1870 = vpop.f32.mrb[0].mxu0
        %v1871 = vadd.f32 %v1806, %v1870
        %v1872 = vpop.f32.mrb[0].mxu0
        %1873 = vmatprep.mubr.bf16.mxu0 0
        %1874 = vmatmul.mubr.bf16.gmra.mrb[0].mxu0 %v1605
        %v1875 = vpop.f32.mrb[0].mxu0
        %v1876 = vadd.f32 %v1811, %v1875
        %v1877 = vpop.f32.mrb[0].mxu0
        %v1878 = vpop.f32.mrb[0].mxu0
        %v1879 = vadd.f32 %v1814, %v1878
        %v1880 = vpop.f32.mrb[0].mxu0
        %1881 = vmatprep.mubr.bf16.mxu0 0
        %1882 = vmatmul.mubr.bf16.gmra.mrb[0].mxu0 %v1608
        %v1883 = vpop.f32.mrb[0].mxu0
        %v1884 = vadd.f32 %v1819, %v1883
        %v1885 = vpop.f32.mrb[0].mxu0
        %v1886 = vpop.f32.mrb[0].mxu0
        %v1887 = vadd.f32 %v1822, %v1886
        %v1888 = vpop.f32.mrb[0].mxu0
        %1889 = vmatprep.mubr.bf16.mxu0 0
        %1890 = vmatmul.mubr.bf16.gmra.mrb[0].mxu0 %v1611
        %v1891 = vpop.f32.mrb[0].mxu0
        %v1892 = vadd.f32 %v1827, %v1891
        %v1893 = vpop.f32.mrb[0].mxu0
        %v1894 = vpop.f32.mrb[0].mxu0
        %v1895 = vadd.f32 %v1830, %v1894
        %v1896 = vpop.f32.mrb[0].mxu0
        %1897 = vdwg.mxu0
        %v1898 = vadd.f32 %v1353, %v1868
        %v1899 = vadd.f32 %v1356, %v1871
        %v1900 = vadd.f32 %v1361, %v1876
        %v1901 = vadd.f32 %v1364, %v1879
        %v1902 = vadd.f32 %v1369, %v1884
        %v1903 = vadd.f32 %v1372, %v1887
        %v1904 = vadd.f32 %v1377, %v1892
        %v1905 = vadd.f32 %v1380, %v1895
        %v1906 = vld [vmem:[%s351] sm:$0x1]
        %v1908 = vlaneseq
        %v1909 = vshrl.u32 %v1908, 7
        %v1910 = vsub.s32 0, %v1909
        %v1911 = vrot.slane %v1906, %v1910
        %v1913 = vadd.f32 %v1898, %v1911
        %v1914 = vadd.f32 %v1899, %v1911
        %v1915 = vadd.f32 %v1900, %v1911
        %v1916 = vadd.f32 %v1901, %v1911
        %v1917 = vadd.f32 %v1902, %v1911
        %v1918 = vadd.f32 %v1903, %v1911
        %v1919 = vadd.f32 %v1904, %v1911
        %v1920 = vadd.f32 %v1905, %v1911
        %v1921 = vpack.c.bf16 %v1913, %v1913
        %v1922 = vpack.c.bf16 %v1914, %v1914
        %v1923 = vpack.c.bf16 %v1915, %v1915
        %v1924 = vpack.c.bf16 %v1916, %v1916
        %v1925 = vpack.c.bf16 %v1917, %v1917
        %v1926 = vpack.c.bf16 %v1918, %v1918
        %v1927 = vpack.c.bf16 %v1919, %v1919
        %v1928 = vpack.c.bf16 %v1920, %v1920
        %1929 = vst [vmem:[%s312] sm:$0xf] %v1921
        %1930 = vst [vmem:[%s312 + $0x4] sm:$0xf] %v1922
        %1931 = vst [vmem:[%s312 + $0x8] sm:$0xf] %v1923
        %1932 = vst [vmem:[%s312 + $0xc] sm:$0xf] %v1924
        %1933 = vst [vmem:[%s312 + $0x10] sm:$0xf] %v1925
        %1934 = vst [vmem:[%s312 + $0x14] sm:$0xf] %v1926
        %1935 = vst [vmem:[%s312 + $0x18] sm:$0xf] %v1927
        %1936 = vst [vmem:[%s312 + $0x1c] sm:$0xf] %v1928
        %s1937 = sand.u32 %s162, 1
        %s1938 = scalar_lea.sflag [#allocation4], %s1937
        %s1939 = sand.u32 %s162, 1
        %s1940 = smul.addr %s1939, 32
        %s1941 = scalar_lea.vmem [#allocation5], %s1940
        // Predicated region
        $region41: #{tpu_custom_call.1} parent=35 // pred_check
          %p1942 = pneg %p172
        $region42: #{tpu_custom_call.1} parent=35 // pred_check_branch
          %1944 = sbr.rel (%p1942) target = $region44
        $region43: #{tpu_custom_call.1} parent=35 // pred_region
          %s1945 = smul.u32 8, %s25
          %s1947 = ssub.s32 512, 512
          %1948 = vsyncadd %s1938, %s1947
          %s1949 = sadd.s32 %s26, %s1945
          %s1950 = smul.addr %s24, 8
          %s1951 = sadd.s32 %s1949, %s1950
          %s1952 = smul.addr %s1951, 64
          %s1953 = scalar_lea.hbm %s4, %s1952
          %s1954 = sshll.u32 %s1941, 4
          %s1955 = int_to_ptr.vmem [resolvable:$true] %s1954
          %1960 = dma.vmem_to_hbm [thread:$0]  %s1955, 512, %s1953, %s1938, 64, 64, 4
        $region44: #{tpu_custom_call.1} parent=35 // pred_fallthru
          _
      $region36: #{tpu_custom_call.1} parent=5 // pred_fallthru
        _
      %p1961 = scmp.le.s32.totalorder 2, %s14
      // Predicated region
      $region45: #{tpu_custom_call.1} parent=5 // pred_check
        %p1962 = pneg %p1961
      $region46: #{tpu_custom_call.1} parent=5 // pred_check_branch
        %1964 = sbr.rel (%p1962) target = $region48
      $region47: #{tpu_custom_call.1} parent=5 // pred_region
        %s1965 = ssub.s32 %s14, 2
        // Predicated region
        $region49: #{tpu_custom_call.1} parent=47 // pred_check
          %p1966 = pneg %p178
        $region50: #{tpu_custom_call.1} parent=47 // pred_check_branch
          %1968 = sbr.rel (%p1966) target = $region52
        $region51: #{tpu_custom_call.1} parent=47 // pred_region
          %s1969 = sand.u32 %s163, 1
          %s1970 = scalar_lea.sflag [#allocation4], %s1969
          %s1971 = sand.u32 %s163, 1
          %s1972 = smul.addr %s1971, 32
          %s1973 = scalar_lea.vmem [#allocation5], %s1972
          %1974 = dma.done %s1970, 512
        $region52: #{tpu_custom_call.1} parent=47 // pred_fallthru
          _
      $region48: #{tpu_custom_call.1} parent=5 // pred_fallthru
        _
    $region6: #{tpu_custom_call.1} parent=1 // loop_footer
      %s18 = sadd.s32 1, %s14
    $region7: #{tpu_custom_call.1} parent=1 // loop_footer_branch
      %13 = sbr.rel target = $region3
    $region8: #{tpu_custom_call.1} parent=1 // loop_exit
      _
    %1975 = vsyncpa [#allocation3], 1
    %s1976 = scalar_lea.sflag [#allocation3], 1
    %1977 = vsyncpa %s1976, 1
    %1978 = vsyncpa [#allocation4], 1
    %s1979 = scalar_lea.sflag [#allocation4], 1
    %1980 = vsyncpa %s1979, 1

</llo_original>
